<compile_context>
chip_gen: v7x
topology: tpu7x:2x2x1
jax: 0.10.0
libtpu: 0.0.40
codegen_flags: <defaults>
</compile_context>

<pallas_src>
import functools

import jax
import jax.numpy as jnp
import numpy as np
from jax.experimental import pallas as pl
from jax.experimental.pallas import tpu as pltpu

EPS = 1e-5


def _layernorm(v, g, b):
    mu = jnp.mean(v, axis=-1, keepdims=True)
    var = jnp.mean((v - mu) ** 2, axis=-1, keepdims=True)
    return (v - mu) * jax.lax.rsqrt(var + EPS) * g + b


def _xc_attention_kernel(
    # inputs
    xq_ref,                # (1, TN, D) f32  query rows for this seq tile
    xc_hbm,                # (B, N, D)  f32  full x, left in HBM (memory_space=ANY)
    g_xn_ref, b_xn_ref,    # cross_attn.norm          (1, D) f32
    g_cn_ref, b_cn_ref,    # cross_attn.context_norm  (1, D) f32
    wq_ref,                # to_q (scale pre-folded)  (D, H*Dh)  bf16
    wkv_ref,               # to_kv fused              (D, 2*Dh)  bf16
    wout_ref,              # to_out                   (H*Dh, D)  bf16
    wa_ref, wg_ref,        # ff[0] chunk              (D, FFC)   bf16
    wff2_ref,              # ff[2] chunk              (FFC, D)   bf16
    g_on_ref, b_on_ref,    # XCAttention.norm         (1, D) f32
    wd_ref,                # dense                    (D, D) bf16
    bd_ref,                # dense bias               (1, D) f32
    # outputs
    o_ref,                 # (1, TN, D)
    # scratch
    ctx_sc,                # (N, D)     f32   raw context rows, one batch element
    kv_sc,                 # (N, 2*Dh)  bf16  cached fused K/V
    xn_sc,                 # (TN, D)    bf16  cached norm(x) for this tile
    acc_sc,                # (TN, D)    f32   attention + FF accumulator
    dma_sem,
    *,
    heads: int,
    dim_head: int,
    approx_recip: bool,
):
    f32 = jnp.float32
    bf16 = jnp.bfloat16
    b = pl.program_id(0)
    n = pl.program_id(1)
    c = pl.program_id(2)
    n_ff = pl.num_programs(2)

    # ---- once per batch element: cache context_norm -> fused K/V -----------
    @pl.when((n == 0) & (c == 0))
    def _build_kv():
        cp = pltpu.make_async_copy(xc_hbm.at[b], ctx_sc, dma_sem)
        cp.start()
        cp.wait()
        cn = _layernorm(ctx_sc[...], g_cn_ref[...], b_cn_ref[...])
        kv = jnp.dot(cn.astype(bf16), wkv_ref[...],
                     preferred_element_type=f32)        # (N, 2*Dh), 256-wide MXU
        kv_sc[...] = kv.astype(bf16)

    # ---- once per (batch, seq tile): attention into the accumulator --------
    @pl.when(c == 0)
    def _attention():
        xn = _layernorm(xq_ref[0], g_xn_ref[...], b_xn_ref[...])
        xn_bf = xn.astype(bf16)
        xn_sc[...] = xn_bf                               # reused by every FF chunk

        q = jnp.dot(xn_bf, wq_ref[...],
                    preferred_element_type=f32)          # (TN, H*Dh); scale folded
        tn = q.shape[0]
        q2 = q.reshape(tn * heads, dim_head).astype(bf16)

        k = kv_sc[:, :dim_head]                          # aligned 128-lane slices
        v = kv_sc[:, dim_head:]
        sim = jax.lax.dot_general(q2, k, (((1,), (1,)), ((), ())),
                                  preferred_element_type=f32)   # (TN*H, N)

        sim = sim - jnp.max(sim, axis=-1, keepdims=True)
        e = jnp.exp(sim)
        denom = jnp.sum(e, axis=-1, keepdims=True)
        if approx_recip:
            inv = pl.reciprocal(denom, approx=True)
        else:
            inv = 1.0 / denom
        attn = (e * inv).astype(bf16)

        out = jnp.dot(attn, v, preferred_element_type=f32)      # (TN*H, Dh)
        out = out.reshape(tn, heads * dim_head)                  # 'b h n d -> b n (h d)'
        acc_sc[...] = jnp.dot(out.astype(bf16), wout_ref[...],
                              preferred_element_type=f32)        # (TN, D)

    # ---- every FF chunk: parallel SwiGLU contribution -----------------------
    xn_bf = xn_sc[...]
    a = jnp.dot(xn_bf, wa_ref[...], preferred_element_type=f32)   # (TN, FFC)
    g = jnp.dot(xn_bf, wg_ref[...], preferred_element_type=f32)   # (TN, FFC)
    ff = (a * jax.nn.silu(g)).astype(bf16)
    acc_sc[...] += jnp.dot(ff, wff2_ref[...], preferred_element_type=f32)

    # ---- last FF chunk: XCAttention tail ------------------------------------
    @pl.when(c == n_ff - 1)
    def _finalize():
        y = _layernorm(acc_sc[...], g_on_ref[...], b_on_ref[...])
        y = jnp.tanh(y) + xq_ref[0]                                # skip = raw x
        y = jnp.dot(y.astype(bf16), wd_ref[...],
                    preferred_element_type=f32) + bd_ref[...]
        o_ref[0] = jnp.tanh(y).astype(o_ref.dtype)
    # TODO(synk): dropout is identity at inference time, so it is omitted.


def _vmem_bytes_estimate(tile_n, ff_tile, N, D, heads, dim_head):
    f32, b16 = 4, 2
    inner = heads * dim_head
    weights = (D * inner + D * 2 * dim_head + inner * D + D * D) * b16   # single-buffered
    ff_w = 2 * (2 * D * ff_tile + ff_tile * D) * b16                      # chunked, double-buffered
    scratch = N * D * f32 + N * 2 * dim_head * b16 + tile_n * D * (b16 + f32)
    io = 2 * 2 * tile_n * D * f32                                         # query + output tiles
    live = (tile_n * inner * f32
            + 2 * tile_n * heads * N * f32        # sim + exp
            + tile_n * heads * N * b16            # bf16 attn
            + 2 * tile_n * ff_tile * f32          # a, gate
            + 2 * tile_n * D * f32)               # tail temporaries
    return weights + ff_w + scratch + io + live


def _pick_tiles(N, D, heads, dim_head, ff_dim, vmem_cap, tile_n, ff_tile):
    budget = int(0.7 * vmem_cap)
    if ff_tile is None:
        ff_tile = ff_dim
        for cand in (1024, 512, 256):
            if ff_dim > cand and ff_dim % cand == 0:
                ff_tile = cand
                break
    if tile_n is None:
        tile_n = 8 if N % 8 == 0 else N
        for cand in (1024, 512, 256, 128, 64, 32, 16, 8):
            if (cand <= N and N % cand == 0 and
                    _vmem_bytes_estimate(cand, ff_tile, N, D, heads, dim_head) <= budget):
                tile_n = cand
                break
    est = _vmem_bytes_estimate(tile_n, ff_tile, N, D, heads, dim_head)
    vmem_limit = int(min(vmem_cap - (2 << 20), max(est + (8 << 20), 32 << 20)))
    return tile_n, ff_tile, vmem_limit


def xc_attention(x, params, *, heads, dim_head, tile_n=None, ff_tile=None,
                 approx_recip=True, out_dtype=jnp.float32):
    (g_xn, b_xn, g_cn, b_cn, wq, wkv, wout, wff1, wff2,
     g_on, b_on, wd, bd) = params
    B, N, D = x.shape
    ff_dim = 4 * D

    bf = lambda w: w.astype(jnp.bfloat16)
    # Fold the attention scale into to_q; keep to_kv fused (single 2*Dh-wide
    # matmul); split ff[0] into value/gate halves (aligned lane slices only).
    wq_b = bf(wq * (dim_head ** -0.5))
    wkv_b = bf(wkv)
    wout_b, wff2_b, wd_b = bf(wout), bf(wff2), bf(wd)
    wa, wg = bf(wff1[:, :ff_dim]), bf(wff1[:, ff_dim:])

    try:
        vmem_cap = int(pltpu.get_tpu_info().vmem_capacity_bytes)
    except Exception:
        vmem_cap = 64 << 20      # conservative fallback (v7x per-TensorCore)
    tile_n, ff_tile, vmem_limit = _pick_tiles(
        N, D, heads, dim_head, ff_dim, vmem_cap, tile_n, ff_tile)
    assert N % tile_n == 0 and ff_dim % ff_tile == 0

    grid = (B, N // tile_n, ff_dim // ff_tile)

    kernel = functools.partial(_xc_attention_kernel, heads=heads,
                               dim_head=dim_head, approx_recip=approx_recip)

    # Grid-invariant operands: whole-array, single-buffered VMEM residents.
    vmem_whole = lambda: pl.BlockSpec(memory_space=pltpu.MemorySpace.VMEM)

    in_specs = [
        pl.BlockSpec((1, tile_n, D), lambda b, n, c: (b, n, 0)),   # query tile
        pl.BlockSpec(memory_space=pl.ANY),                         # full context, stays in HBM
        vmem_whole(), vmem_whole(), vmem_whole(), vmem_whole(),    # LN params
        vmem_whole(),                                              # wq
        vmem_whole(),                                              # wkv
        vmem_whole(),                                              # wout
        pl.BlockSpec((D, ff_tile), lambda b, n, c: (0, c)),        # wa chunk
        pl.BlockSpec((D, ff_tile), lambda b, n, c: (0, c)),        # wg chunk
        pl.BlockSpec((ff_tile, D), lambda b, n, c: (c, 0)),        # wff2 chunk
        vmem_whole(), vmem_whole(),                                # out-norm params
        vmem_whole(),                                              # wd
        vmem_whole(),                                              # bd
    ]

    scratch_shapes = [
        pltpu.VMEM((N, D), jnp.float32),               # raw context (one batch element)
        pltpu.VMEM((N, 2 * dim_head), jnp.bfloat16),   # cached fused K/V
        pltpu.VMEM((tile_n, D), jnp.bfloat16),         # cached norm(x) tile
        pltpu.VMEM((tile_n, D), jnp.float32),          # attention + FF accumulator
        pltpu.SemaphoreType.DMA,                       # context DMA completion
    ]

    return pl.pallas_call(
        kernel,
        out_shape=jax.ShapeDtypeStruct((B, N, D), out_dtype),
        grid=grid,
        in_specs=in_specs,
        out_specs=pl.BlockSpec((1, tile_n, D), lambda b, n, c: (b, n, 0)),
        scratch_shapes=scratch_shapes,
        compiler_params=pltpu.CompilerParams(
            # Seq + FF axes must run sequentially on a core (scratch caching /
            # accumulation); batch still feeds v7x's two TensorCores.
            dimension_semantics=("parallel", "arbitrary", "arbitrary"),
            vmem_limit_bytes=vmem_limit,
        ),
    )(x, x, g_xn, b_xn, g_cn, b_cn, wq_b, wkv_b, wout_b, wa, wg, wff2_b,
      g_on, b_on, wd_b, bd)


def _reference(x, params, *, heads, dim_head):
    """Pure-JAX f32 reference (same math as the PyTorch module)."""
    (g_xn, b_xn, g_cn, b_cn, wq, wkv, wout, wff1, wff2,
     g_on, b_on, wd, bd) = params
    B, N, D = x.shape
    scale = dim_head ** (-0.5)
    skip = x
    xn = _layernorm(x, g_xn[0], b_xn[0])
    cn = _layernorm(x, g_cn[0], b_cn[0])
    q = xn @ wq                                   # (B, N, H*Dh)
    kv = cn @ wkv
    k, v = kv[..., :dim_head], kv[..., dim_head:]
    q = q.reshape(B, N, heads, dim_head).transpose(0, 2, 1, 3) * scale
    sim = jnp.einsum('bhid,bjd->bhij', q, k)
    attn = jax.nn.softmax(sim, axis=-1)
    out = jnp.einsum('bhij,bjd->bhid', attn, v)
    out = out.transpose(0, 2, 1, 3).reshape(B, N, heads * dim_head)
    out = out @ wout
    ff_h = xn @ wff1
    a, gate = ff_h[..., :4 * D], ff_h[..., 4 * D:]
    out = out + (a * jax.nn.silu(gate)) @ wff2
    y = _layernorm(out, g_on[0], b_on[0])
    y = jnp.tanh(y) + skip
    y = y @ wd + bd[0]
    return jnp.tanh(y)


def _init_params(key, dim, heads, dim_head):
    inner = heads * dim_head
    ks = jax.random.split(key, 8)
    n = lambda k, shape, fan_in: (jax.random.normal(k, shape, jnp.float32)
                                  / np.sqrt(fan_in))
    g_xn = jnp.ones((1, dim), jnp.float32); b_xn = jnp.zeros((1, dim), jnp.float32)
    g_cn = jnp.ones((1, dim), jnp.float32); b_cn = jnp.zeros((1, dim), jnp.float32)
    g_on = jnp.ones((1, dim), jnp.float32); b_on = jnp.zeros((1, dim), jnp.float32)
    wq = n(ks[0], (dim, inner), dim)
    wkv = n(ks[1], (dim, 2 * dim_head), dim)
    wout = n(ks[2], (inner, dim), inner)
    wff1 = n(ks[3], (dim, 8 * dim), dim)
    wff2 = n(ks[4], (4 * dim, dim), 4 * dim)
    wd = n(ks[5], (dim, dim), dim)
    bd = 0.1 * jax.random.normal(ks[6], (1, dim), jnp.float32)
    return (g_xn, b_xn, g_cn, b_cn, wq, wkv, wout, wff1, wff2,
            g_on, b_on, wd, bd)


if __name__ == "__main__":
    # Small but lane-dense shapes: D multiple of 128, H*Dh multiple of 256.
    B, N, D = 2, 16, 128
    heads, dim_head = 2, 128

    key = jax.random.PRNGKey(0)
    kx, kp = jax.random.split(key)
    x = jax.random.normal(kx, (B, N, D), jnp.float32)
    params = _init_params(kp, D, heads, dim_head)

    # Force tile_n=8 (2 seq tiles) and ff_tile=256 (2 FF chunks) so the K/V
    # caching and FF accumulation paths are exercised even at demo shapes.
    out = xc_attention(x, params, heads=heads, dim_head=dim_head,
                       tile_n=8, ff_tile=256)
    out = jax.block_until_ready(out)

    ref = _reference(x, params, heads=heads, dim_head=dim_head)
    out_np = np.asarray(out, np.float32)
    ref_np = np.asarray(ref)
    max_err = float(np.max(np.abs(out_np - ref_np)))
    # bf16 MXU inputs + approximate softmax reciprocal => relaxed tolerance vs
    # the pure-f32 reference (outputs are tanh-bounded, so atol is meaningful).
    if not np.allclose(out_np, ref_np, atol=5e-2, rtol=5e-2):
        raise AssertionError(
            f"Pallas kernel output mismatch vs reference (max abs err {max_err:.3e})")
    print("KERNEL_OK")
</pallas_src>

<mosaic_0001>
module attributes {stable_mosaic.version = 11 : i64} {
  func.func @_xc_attention_kernel(%arg0: i32, %arg1: i32, %arg2: i32, %arg3: memref<1x8x128xf32, #tpu.memory_space<vmem>>, %arg4: memref<2x16x128xf32, #tpu.memory_space<any>>, %arg5: memref<1x128xf32, #tpu.memory_space<vmem>>, %arg6: memref<1x128xf32, #tpu.memory_space<vmem>>, %arg7: memref<1x128xf32, #tpu.memory_space<vmem>>, %arg8: memref<1x128xf32, #tpu.memory_space<vmem>>, %arg9: memref<128x256xbf16, #tpu.memory_space<vmem>>, %arg10: memref<128x256xbf16, #tpu.memory_space<vmem>>, %arg11: memref<256x128xbf16, #tpu.memory_space<vmem>>, %arg12: memref<128x256xbf16, #tpu.memory_space<vmem>>, %arg13: memref<128x256xbf16, #tpu.memory_space<vmem>>, %arg14: memref<256x128xbf16, #tpu.memory_space<vmem>>, %arg15: memref<1x128xf32, #tpu.memory_space<vmem>>, %arg16: memref<1x128xf32, #tpu.memory_space<vmem>>, %arg17: memref<128x128xbf16, #tpu.memory_space<vmem>>, %arg18: memref<1x128xf32, #tpu.memory_space<vmem>>, %arg19: memref<1x8x128xf32, #tpu.memory_space<vmem>>, %arg20: memref<16x128xf32, #tpu.memory_space<vmem>>, %arg21: memref<16x256xbf16, #tpu.memory_space<vmem>>, %arg22: memref<8x128xbf16, #tpu.memory_space<vmem>>, %arg23: memref<8x128xf32, #tpu.memory_space<vmem>>, %arg24: memref<!tpu.dma_semaphore, #tpu.memory_space<semaphore_mem>>) attributes {dimension_semantics = [#tpu.dimension_semantics<parallel>, #tpu.dimension_semantics<arbitrary>, #tpu.dimension_semantics<arbitrary>], iteration_bounds = array<i64: 2, 2, 2>, scalar_prefetch = 0 : i64, scratch_operands = 5 : i64, tpu.core_type = #tpu.core_type<tc>, window_params = [{transform_indices = @transform_0, window_bounds = array<i64: 1, 8, 128>}, {}, {pipeline_mode = #tpu.pipeline_mode<synchronous>, transform_indices = @transform_2, window_bounds = array<i64: 1, 128>}, {pipeline_mode = #tpu.pipeline_mode<synchronous>, transform_indices = @transform_3, window_bounds = array<i64: 1, 128>}, {pipeline_mode = #tpu.pipeline_mode<synchronous>, transform_indices = @transform_4, window_bounds = array<i64: 1, 128>}, {pipeline_mode = #tpu.pipeline_mode<synchronous>, transform_indices = @transform_5, window_bounds = array<i64: 1, 128>}, {pipeline_mode = #tpu.pipeline_mode<synchronous>, transform_indices = @transform_6, window_bounds = array<i64: 128, 256>}, {pipeline_mode = #tpu.pipeline_mode<synchronous>, transform_indices = @transform_7, window_bounds = array<i64: 128, 256>}, {pipeline_mode = #tpu.pipeline_mode<synchronous>, transform_indices = @transform_8, window_bounds = array<i64: 256, 128>}, {transform_indices = @transform_9, window_bounds = array<i64: 128, 256>}, {transform_indices = @transform_10, window_bounds = array<i64: 128, 256>}, {transform_indices = @transform_11, window_bounds = array<i64: 256, 128>}, {pipeline_mode = #tpu.pipeline_mode<synchronous>, transform_indices = @transform_12, window_bounds = array<i64: 1, 128>}, {pipeline_mode = #tpu.pipeline_mode<synchronous>, transform_indices = @transform_13, window_bounds = array<i64: 1, 128>}, {pipeline_mode = #tpu.pipeline_mode<synchronous>, transform_indices = @transform_14, window_bounds = array<i64: 128, 128>}, {pipeline_mode = #tpu.pipeline_mode<synchronous>, transform_indices = @transform_15, window_bounds = array<i64: 1, 128>}, {transform_indices = @transform_16, window_bounds = array<i64: 1, 8, 128>}]} {
    %c0_i32 = arith.constant 0 : i32
    %0 = arith.cmpi eq, %arg1, %c0_i32 : i32
    %c0_i32_0 = arith.constant 0 : i32
    %1 = arith.cmpi eq, %arg2, %c0_i32_0 : i32
    %2 = arith.andi %0, %1 : i1
    %3 = arith.extui %2 : i1 to i32
    %c0_i32_1 = arith.constant 0 : i32
    %4 = arith.cmpi ne, %3, %c0_i32_1 : i32
    scf.if %4 {
      %c0_i32_19 = arith.constant 0 : i32
      %c0_i32_20 = arith.constant 0 : i32
      %29 = tpu.memref_slice %arg4[%arg0, %c0_i32_19, %c0_i32_20] : memref<2x16x128xf32, #tpu.memory_space<any>> -> memref<1x16x128xf32, #tpu.memory_space<any>>
      %30 = tpu.memref_squeeze %29 : memref<1x16x128xf32, #tpu.memory_space<any>> -> memref<16x128xf32, #tpu.memory_space<any>>
      tpu.enqueue_dma source(%30 : memref<16x128xf32, #tpu.memory_space<any>>) target(%arg20 : memref<16x128xf32, #tpu.memory_space<vmem>>) target_semaphore(%arg24 : memref<!tpu.dma_semaphore, #tpu.memory_space<semaphore_mem>>)
      %c0_i32_21 = arith.constant 0 : i32
      %c0_i32_22 = arith.constant 0 : i32
      %31 = tpu.memref_slice %arg4[%arg0, %c0_i32_21, %c0_i32_22] : memref<2x16x128xf32, #tpu.memory_space<any>> -> memref<1x16x128xf32, #tpu.memory_space<any>>
      %32 = tpu.memref_squeeze %31 : memref<1x16x128xf32, #tpu.memory_space<any>> -> memref<16x128xf32, #tpu.memory_space<any>>
      tpu.wait_dma2 semaphore(%arg24 : memref<!tpu.dma_semaphore, #tpu.memory_space<semaphore_mem>>) src(%32 : memref<16x128xf32, #tpu.memory_space<any>>) dst(%arg20 : memref<16x128xf32, #tpu.memory_space<vmem>>)
      %c0_23 = arith.constant 0 : index
      %c0_24 = arith.constant 0 : index
      %33 = vector.load %arg20[%c0_23, %c0_24] : memref<16x128xf32, #tpu.memory_space<vmem>>, vector<16x128xf32>
      %c0_25 = arith.constant 0 : index
      %c0_26 = arith.constant 0 : index
      %34 = vector.load %arg7[%c0_25, %c0_26] : memref<1x128xf32, #tpu.memory_space<vmem>>, vector<1x128xf32>
      %c0_27 = arith.constant 0 : index
      %c0_28 = arith.constant 0 : index
      %35 = vector.load %arg8[%c0_27, %c0_28] : memref<1x128xf32, #tpu.memory_space<vmem>>, vector<1x128xf32>
      %cst_29 = arith.constant dense<0.000000e+00> : vector<16xf32>
      %36 = vector.multi_reduction <add>, %33, %cst_29 [1] : vector<16x128xf32> to vector<16xf32>
      %37 = vector.shape_cast %36 : vector<16xf32> to vector<16x1xf32>
      %cst_30 = arith.constant 1.280000e+02 : f32
      %38 = vector.broadcast %cst_30 : f32 to vector<16x1xf32>
      %39 = arith.divf %37, %38 : vector<16x1xf32>
      %40 = vector.broadcast %39 : vector<16x1xf32> to vector<16x128xf32>
      %41 = arith.subf %33, %40 : vector<16x128xf32>
      %42 = arith.mulf %41, %41 : vector<16x128xf32>
      %cst_31 = arith.constant dense<0.000000e+00> : vector<16xf32>
      %43 = vector.multi_reduction <add>, %42, %cst_31 [1] : vector<16x128xf32> to vector<16xf32>
      %44 = vector.shape_cast %43 : vector<16xf32> to vector<16x1xf32>
      %cst_32 = arith.constant 1.280000e+02 : f32
      %45 = vector.broadcast %cst_32 : f32 to vector<16x1xf32>
      %46 = arith.divf %44, %45 : vector<16x1xf32>
      %47 = vector.broadcast %39 : vector<16x1xf32> to vector<16x128xf32>
      %48 = arith.subf %33, %47 : vector<16x128xf32>
      %cst_33 = arith.constant 9.99999974E-6 : f32
      %49 = vector.broadcast %cst_33 : f32 to vector<16x1xf32>
      %50 = arith.addf %46, %49 : vector<16x1xf32>
      %51 = math.rsqrt %50 : vector<16x1xf32>
      %52 = vector.broadcast %51 : vector<16x1xf32> to vector<16x128xf32>
      %53 = arith.mulf %48, %52 : vector<16x128xf32>
      %54 = vector.broadcast %34 : vector<1x128xf32> to vector<16x128xf32>
      %55 = arith.mulf %53, %54 : vector<16x128xf32>
      %56 = vector.broadcast %35 : vector<1x128xf32> to vector<16x128xf32>
      %57 = arith.addf %55, %56 : vector<16x128xf32>
      %58 = arith.truncf %57 : vector<16x128xf32> to vector<16x128xbf16>
      %c0_34 = arith.constant 0 : index
      %c0_35 = arith.constant 0 : index
      %59 = vector.load %arg10[%c0_34, %c0_35] : memref<128x256xbf16, #tpu.memory_space<vmem>>, vector<128x256xbf16>
      %cst_36 = arith.constant dense<0.000000e+00> : vector<16x256xf32>
      %60 = tpu.matmul %58, %59, %cst_36 {dimension_numbers = #tpu.dot_dimension_numbers<[1], [0], [0], [1], [0, 0, 1, 1], [], []>} : vector<16x128xbf16>, vector<128x256xbf16>, vector<16x256xf32> -> vector<16x256xf32>
      %61 = arith.truncf %60 : vector<16x256xf32> to vector<16x256xbf16>
      %c0_37 = arith.constant 0 : index
      %c0_38 = arith.constant 0 : index
      %62 = vector.load %arg21[%c0_37, %c0_38] : memref<16x256xbf16, #tpu.memory_space<vmem>>, vector<16x256xbf16>
      tpu.vector_store %arg21[%c0_37, %c0_38], %61 {strides = array<i32>} : memref<16x256xbf16, #tpu.memory_space<vmem>>, vector<16x256xbf16>,
    } else {
    }
    %c0_i32_2 = arith.constant 0 : i32
    %5 = arith.cmpi eq, %arg2, %c0_i32_2 : i32
    %6 = arith.extui %5 : i1 to i32
    %c0_i32_3 = arith.constant 0 : i32
    %7 = arith.cmpi ne, %6, %c0_i32_3 : i32
    scf.if %7 {
      %c0_19 = arith.constant 0 : index
      %c0_20 = arith.constant 0 : index
      %c0_21 = arith.constant 0 : index
      %29 = vector.load %arg3[%c0_19, %c0_20, %c0_21] : memref<1x8x128xf32, #tpu.memory_space<vmem>>, vector<1x8x128xf32>
      %30 = vector.shape_cast %29 : vector<1x8x128xf32> to vector<8x128xf32>
      %c0_22 = arith.constant 0 : index
      %c0_23 = arith.constant 0 : index
      %31 = vector.load %arg5[%c0_22, %c0_23] : memref<1x128xf32, #tpu.memory_space<vmem>>, vector<1x128xf32>
      %c0_24 = arith.constant 0 : index
      %c0_25 = arith.constant 0 : index
      %32 = vector.load %arg6[%c0_24, %c0_25] : memref<1x128xf32, #tpu.memory_space<vmem>>, vector<1x128xf32>
      %cst_26 = arith.constant dense<0.000000e+00> : vector<8xf32>
      %33 = vector.multi_reduction <add>, %30, %cst_26 [1] : vector<8x128xf32> to vector<8xf32>
      %34 = vector.shape_cast %33 : vector<8xf32> to vector<8x1xf32>
      %cst_27 = arith.constant 1.280000e+02 : f32
      %35 = vector.broadcast %cst_27 : f32 to vector<8x1xf32>
      %36 = arith.divf %34, %35 : vector<8x1xf32>
      %37 = vector.broadcast %36 : vector<8x1xf32> to vector<8x128xf32>
      %38 = arith.subf %30, %37 : vector<8x128xf32>
      %39 = arith.mulf %38, %38 : vector<8x128xf32>
      %cst_28 = arith.constant dense<0.000000e+00> : vector<8xf32>
      %40 = vector.multi_reduction <add>, %39, %cst_28 [1] : vector<8x128xf32> to vector<8xf32>
      %41 = vector.shape_cast %40 : vector<8xf32> to vector<8x1xf32>
      %cst_29 = arith.constant 1.280000e+02 : f32
      %42 = vector.broadcast %cst_29 : f32 to vector<8x1xf32>
      %43 = arith.divf %41, %42 : vector<8x1xf32>
      %44 = vector.broadcast %36 : vector<8x1xf32> to vector<8x128xf32>
      %45 = arith.subf %30, %44 : vector<8x128xf32>
      %cst_30 = arith.constant 9.99999974E-6 : f32
      %46 = vector.broadcast %cst_30 : f32 to vector<8x1xf32>
      %47 = arith.addf %43, %46 : vector<8x1xf32>
      %48 = math.rsqrt %47 : vector<8x1xf32>
      %49 = vector.broadcast %48 : vector<8x1xf32> to vector<8x128xf32>
      %50 = arith.mulf %45, %49 : vector<8x128xf32>
      %51 = vector.broadcast %31 : vector<1x128xf32> to vector<8x128xf32>
      %52 = arith.mulf %50, %51 : vector<8x128xf32>
      %53 = vector.broadcast %32 : vector<1x128xf32> to vector<8x128xf32>
      %54 = arith.addf %52, %53 : vector<8x128xf32>
      %55 = arith.truncf %54 : vector<8x128xf32> to vector<8x128xbf16>
      %c0_31 = arith.constant 0 : index
      %c0_32 = arith.constant 0 : index
      %56 = vector.load %arg22[%c0_31, %c0_32] : memref<8x128xbf16, #tpu.memory_space<vmem>>, vector<8x128xbf16>
      tpu.vector_store %arg22[%c0_31, %c0_32], %55 {strides = array<i32>} : memref<8x128xbf16, #tpu.memory_space<vmem>>, vector<8x128xbf16>,
      %c0_33 = arith.constant 0 : index
      %c0_34 = arith.constant 0 : index
      %57 = vector.load %arg9[%c0_33, %c0_34] : memref<128x256xbf16, #tpu.memory_space<vmem>>, vector<128x256xbf16>
      %cst_35 = arith.constant dense<0.000000e+00> : vector<8x256xf32>
      %58 = tpu.matmul %55, %57, %cst_35 {dimension_numbers = #tpu.dot_dimension_numbers<[1], [0], [0], [1], [0, 0, 1, 1], [], []>} : vector<8x128xbf16>, vector<128x256xbf16>, vector<8x256xf32> -> vector<8x256xf32>
      %59 = vector.shape_cast %58 : vector<8x256xf32> to vector<16x128xf32>
      %60 = arith.truncf %59 : vector<16x128xf32> to vector<16x128xbf16>
      %c0_36 = arith.constant 0 : index
      %c0_37 = arith.constant 0 : index
      %61 = vector.load %arg21[%c0_36, %c0_37] : memref<16x256xbf16, #tpu.memory_space<vmem>>, vector<16x128xbf16>
      %c0_38 = arith.constant 0 : index
      %c128 = arith.constant 128 : index
      %62 = vector.load %arg21[%c0_38, %c128] : memref<16x256xbf16, #tpu.memory_space<vmem>>, vector<16x128xbf16>
      %cst_39 = arith.constant dense<0.000000e+00> : vector<16x16xf32>
      %63 = tpu.matmul %60, %61, %cst_39 {dimension_numbers = #tpu.dot_dimension_numbers<[1], [1], [0], [0], [0, 0, 1, 0], [], []>} : vector<16x128xbf16>, vector<16x128xbf16>, vector<16x16xf32> -> vector<16x16xf32>
      %cst_40 = arith.constant dense<0xFF800000> : vector<16xf32>
      %64 = vector.multi_reduction <maximumf>, %63, %cst_40 [1] : vector<16x16xf32> to vector<16xf32>
      %65 = vector.shape_cast %64 : vector<16xf32> to vector<16x1xf32>
      %66 = vector.broadcast %65 : vector<16x1xf32> to vector<16x16xf32>
      %67 = arith.subf %63, %66 : vector<16x16xf32>
      %68 = math.exp %67 : vector<16x16xf32>
      %cst_41 = arith.constant dense<0.000000e+00> : vector<16xf32>
      %69 = vector.multi_reduction <add>, %68, %cst_41 [1] : vector<16x16xf32> to vector<16xf32>
      %70 = vector.shape_cast %69 : vector<16xf32> to vector<16x1xf32>
      %71 = tpu.reciprocal %70 {approx = true} : vector<16x1xf32> -> vector<16x1xf32>
      %72 = vector.broadcast %71 : vector<16x1xf32> to vector<16x16xf32>
      %73 = arith.mulf %68, %72 : vector<16x16xf32>
      %74 = arith.truncf %73 : vector<16x16xf32> to vector<16x16xbf16>
      %cst_42 = arith.constant dense<0.000000e+00> : vector<16x128xf32>
      %75 = tpu.matmul %74, %62, %cst_42 {dimension_numbers = #tpu.dot_dimension_numbers<[1], [0], [0], [1], [0, 0, 1, 1], [], []>} : vector<16x16xbf16>, vector<16x128xbf16>, vector<16x128xf32> -> vector<16x128xf32>
      %76 = vector.shape_cast %75 : vector<16x128xf32> to vector<8x256xf32>
      %77 = arith.truncf %76 : vector<8x256xf32> to vector<8x256xbf16>
      %c0_43 = arith.constant 0 : index
      %c0_44 = arith.constant 0 : index
      %78 = vector.load %arg11[%c0_43, %c0_44] : memref<256x128xbf16, #tpu.memory_space<vmem>>, vector<256x128xbf16>
      %cst_45 = arith.constant dense<0.000000e+00> : vector<8x128xf32>
      %79 = tpu.matmul %77, %78, %cst_45 {dimension_numbers = #tpu.dot_dimension_numbers<[1], [0], [0], [1], [0, 0, 1, 1], [], []>} : vector<8x256xbf16>, vector<256x128xbf16>, vector<8x128xf32> -> vector<8x128xf32>
      %c0_46 = arith.constant 0 : index
      %c0_47 = arith.constant 0 : index
      %80 = vector.load %arg23[%c0_46, %c0_47] : memref<8x128xf32, #tpu.memory_space<vmem>>, vector<8x128xf32>
      tpu.vector_store %arg23[%c0_46, %c0_47], %79 {strides = array<i32>} : memref<8x128xf32, #tpu.memory_space<vmem>>, vector<8x128xf32>,
    } else {
    }
    %c0 = arith.constant 0 : index
    %c0_4 = arith.constant 0 : index
    %8 = vector.load %arg22[%c0, %c0_4] : memref<8x128xbf16, #tpu.memory_space<vmem>>, vector<8x128xbf16>
    %c0_5 = arith.constant 0 : index
    %c0_6 = arith.constant 0 : index
    %9 = vector.load %arg12[%c0_5, %c0_6] : memref<128x256xbf16, #tpu.memory_space<vmem>>, vector<128x256xbf16>
    %cst = arith.constant dense<0.000000e+00> : vector<8x256xf32>
    %10 = tpu.matmul %8, %9, %cst {dimension_numbers = #tpu.dot_dimension_numbers<[1], [0], [0], [1], [0, 0, 1, 1], [], []>} : vector<8x128xbf16>, vector<128x256xbf16>, vector<8x256xf32> -> vector<8x256xf32>
    %c0_7 = arith.constant 0 : index
    %c0_8 = arith.constant 0 : index
    %11 = vector.load %arg13[%c0_7, %c0_8] : memref<128x256xbf16, #tpu.memory_space<vmem>>, vector<128x256xbf16>
    %cst_9 = arith.constant dense<0.000000e+00> : vector<8x256xf32>
    %12 = tpu.matmul %8, %11, %cst_9 {dimension_numbers = #tpu.dot_dimension_numbers<[1], [0], [0], [1], [0, 0, 1, 1], [], []>} : vector<8x128xbf16>, vector<128x256xbf16>, vector<8x256xf32> -> vector<8x256xf32>
    %13 = arith.negf %12 : vector<8x256xf32>
    %14 = math.exp %13 : vector<8x256xf32>
    %cst_10 = arith.constant 1.000000e+00 : f32
    %15 = vector.broadcast %cst_10 : f32 to vector<8x256xf32>
    %16 = arith.addf %15, %14 : vector<8x256xf32>
    %17 = arith.divf %15, %16 : vector<8x256xf32>
    %18 = arith.mulf %12, %17 : vector<8x256xf32>
    %19 = arith.mulf %10, %18 : vector<8x256xf32>
    %20 = arith.truncf %19 : vector<8x256xf32> to vector<8x256xbf16>
    %c0_11 = arith.constant 0 : index
    %c0_12 = arith.constant 0 : index
    %21 = vector.load %arg23[%c0_11, %c0_12] : memref<8x128xf32, #tpu.memory_space<vmem>>, vector<8x128xf32>
    %c0_13 = arith.constant 0 : index
    %c0_14 = arith.constant 0 : index
    %22 = vector.load %arg14[%c0_13, %c0_14] : memref<256x128xbf16, #tpu.memory_space<vmem>>, vector<256x128xbf16>
    %cst_15 = arith.constant dense<0.000000e+00> : vector<8x128xf32>
    %23 = tpu.matmul %20, %22, %cst_15 {dimension_numbers = #tpu.dot_dimension_numbers<[1], [0], [0], [1], [0, 0, 1, 1], [], []>} : vector<8x256xbf16>, vector<256x128xbf16>, vector<8x128xf32> -> vector<8x128xf32>
    %24 = arith.addf %21, %23 : vector<8x128xf32>
    %c0_16 = arith.constant 0 : index
    %c0_17 = arith.constant 0 : index
    %25 = vector.load %arg23[%c0_16, %c0_17] : memref<8x128xf32, #tpu.memory_space<vmem>>, vector<8x128xf32>
    tpu.vector_store %arg23[%c0_16, %c0_17], %24 {strides = array<i32>} : memref<8x128xf32, #tpu.memory_space<vmem>>, vector<8x128xf32>,
    %c1_i32 = arith.constant 1 : i32
    %26 = arith.cmpi eq, %arg2, %c1_i32 : i32
    %27 = arith.extui %26 : i1 to i32
    %c0_i32_18 = arith.constant 0 : i32
    %28 = arith.cmpi ne, %27, %c0_i32_18 : i32
    scf.if %28 {
      %c0_19 = arith.constant 0 : index
      %c0_20 = arith.constant 0 : index
      %29 = vector.load %arg23[%c0_19, %c0_20] : memref<8x128xf32, #tpu.memory_space<vmem>>, vector<8x128xf32>
      %c0_21 = arith.constant 0 : index
      %c0_22 = arith.constant 0 : index
      %30 = vector.load %arg15[%c0_21, %c0_22] : memref<1x128xf32, #tpu.memory_space<vmem>>, vector<1x128xf32>
      %c0_23 = arith.constant 0 : index
      %c0_24 = arith.constant 0 : index
      %31 = vector.load %arg16[%c0_23, %c0_24] : memref<1x128xf32, #tpu.memory_space<vmem>>, vector<1x128xf32>
      %cst_25 = arith.constant dense<0.000000e+00> : vector<8xf32>
      %32 = vector.multi_reduction <add>, %29, %cst_25 [1] : vector<8x128xf32> to vector<8xf32>
      %33 = vector.shape_cast %32 : vector<8xf32> to vector<8x1xf32>
      %cst_26 = arith.constant 1.280000e+02 : f32
      %34 = vector.broadcast %cst_26 : f32 to vector<8x1xf32>
      %35 = arith.divf %33, %34 : vector<8x1xf32>
      %36 = vector.broadcast %35 : vector<8x1xf32> to vector<8x128xf32>
      %37 = arith.subf %29, %36 : vector<8x128xf32>
      %38 = arith.mulf %37, %37 : vector<8x128xf32>
      %cst_27 = arith.constant dense<0.000000e+00> : vector<8xf32>
      %39 = vector.multi_reduction <add>, %38, %cst_27 [1] : vector<8x128xf32> to vector<8xf32>
      %40 = vector.shape_cast %39 : vector<8xf32> to vector<8x1xf32>
      %cst_28 = arith.constant 1.280000e+02 : f32
      %41 = vector.broadcast %cst_28 : f32 to vector<8x1xf32>
      %42 = arith.divf %40, %41 : vector<8x1xf32>
      %43 = vector.broadcast %35 : vector<8x1xf32> to vector<8x128xf32>
      %44 = arith.subf %29, %43 : vector<8x128xf32>
      %cst_29 = arith.constant 9.99999974E-6 : f32
      %45 = vector.broadcast %cst_29 : f32 to vector<8x1xf32>
      %46 = arith.addf %42, %45 : vector<8x1xf32>
      %47 = math.rsqrt %46 : vector<8x1xf32>
      %48 = vector.broadcast %47 : vector<8x1xf32> to vector<8x128xf32>
      %49 = arith.mulf %44, %48 : vector<8x128xf32>
      %50 = vector.broadcast %30 : vector<1x128xf32> to vector<8x128xf32>
      %51 = arith.mulf %49, %50 : vector<8x128xf32>
      %52 = vector.broadcast %31 : vector<1x128xf32> to vector<8x128xf32>
      %53 = arith.addf %51, %52 : vector<8x128xf32>
      %54 = math.tanh %53 : vector<8x128xf32>
      %c0_30 = arith.constant 0 : index
      %c0_31 = arith.constant 0 : index
      %c0_32 = arith.constant 0 : index
      %55 = vector.load %arg3[%c0_30, %c0_31, %c0_32] : memref<1x8x128xf32, #tpu.memory_space<vmem>>, vector<1x8x128xf32>
      %56 = vector.shape_cast %55 : vector<1x8x128xf32> to vector<8x128xf32>
      %57 = arith.addf %54, %56 : vector<8x128xf32>
      %58 = arith.truncf %57 : vector<8x128xf32> to vector<8x128xbf16>
      %c0_33 = arith.constant 0 : index
      %c0_34 = arith.constant 0 : index
      %59 = vector.load %arg17[%c0_33, %c0_34] : memref<128x128xbf16, #tpu.memory_space<vmem>>, vector<128x128xbf16>
      %cst_35 = arith.constant dense<0.000000e+00> : vector<8x128xf32>
      %60 = tpu.matmul %58, %59, %cst_35 {dimension_numbers = #tpu.dot_dimension_numbers<[1], [0], [0], [1], [0, 0, 1, 1], [], []>} : vector<8x128xbf16>, vector<128x128xbf16>, vector<8x128xf32> -> vector<8x128xf32>
      %c0_36 = arith.constant 0 : index
      %c0_37 = arith.constant 0 : index
      %61 = vector.load %arg18[%c0_36, %c0_37] : memref<1x128xf32, #tpu.memory_space<vmem>>, vector<1x128xf32>
      %62 = vector.broadcast %61 : vector<1x128xf32> to vector<8x128xf32>
      %63 = arith.addf %60, %62 : vector<8x128xf32>
      %64 = math.tanh %63 : vector<8x128xf32>
      %c0_38 = arith.constant 0 : index
      %c0_39 = arith.constant 0 : index
      %c0_40 = arith.constant 0 : index
      %65 = vector.load %arg19[%c0_38, %c0_39, %c0_40] : memref<1x8x128xf32, #tpu.memory_space<vmem>>, vector<1x8x128xf32>
      %66 = vector.shape_cast %65 : vector<1x8x128xf32> to vector<8x128xf32>
      %67 = vector.shape_cast %64 : vector<8x128xf32> to vector<1x8x128xf32>
      tpu.vector_store %arg19[%c0_38, %c0_39, %c0_40], %67 {strides = array<i32>} : memref<1x8x128xf32, #tpu.memory_space<vmem>>, vector<1x8x128xf32>,
    } else {
    }
    return
  }
  func.func @transform_0(%arg0: i32, %arg1: i32, %arg2: i32) -> (i32, i32, i32) {
    %c0_i32 = arith.constant 0 : i32
    %c0_i32_0 = arith.constant 0 : i32
    return %arg0, %arg1, %c0_i32 : i32, i32, i32
  }
  func.func @transform_2(%arg0: i32, %arg1: i32, %arg2: i32) -> (i32, i32) {
    %c0_i32 = arith.constant 0 : i32
    %c0_i32_0 = arith.constant 0 : i32
    %c0_i32_1 = arith.constant 0 : i32
    return %c0_i32, %c0_i32_0 : i32, i32
  }
  func.func @transform_3(%arg0: i32, %arg1: i32, %arg2: i32) -> (i32, i32) {
    %c0_i32 = arith.constant 0 : i32
    %c0_i32_0 = arith.constant 0 : i32
    %c0_i32_1 = arith.constant 0 : i32
    return %c0_i32, %c0_i32_0 : i32, i32
  }
  func.func @transform_4(%arg0: i32, %arg1: i32, %arg2: i32) -> (i32, i32) {
    %c0_i32 = arith.constant 0 : i32
    %c0_i32_0 = arith.constant 0 : i32
    %c0_i32_1 = arith.constant 0 : i32
    return %c0_i32, %c0_i32_0 : i32, i32
  }
  func.func @transform_5(%arg0: i32, %arg1: i32, %arg2: i32) -> (i32, i32) {
    %c0_i32 = arith.constant 0 : i32
    %c0_i32_0 = arith.constant 0 : i32
    %c0_i32_1 = arith.constant 0 : i32
    return %c0_i32, %c0_i32_0 : i32, i32
  }
  func.func @transform_6(%arg0: i32, %arg1: i32, %arg2: i32) -> (i32, i32) {
    %c0_i32 = arith.constant 0 : i32
    %c0_i32_0 = arith.constant 0 : i32
    %c0_i32_1 = arith.constant 0 : i32
    return %c0_i32, %c0_i32_0 : i32, i32
  }
  func.func @transform_7(%arg0: i32, %arg1: i32, %arg2: i32) -> (i32, i32) {
    %c0_i32 = arith.constant 0 : i32
    %c0_i32_0 = arith.constant 0 : i32
    %c0_i32_1 = arith.constant 0 : i32
    return %c0_i32, %c0_i32_0 : i32, i32
  }
  func.func @transform_8(%arg0: i32, %arg1: i32, %arg2: i32) -> (i32, i32) {
    %c0_i32 = arith.constant 0 : i32
    %c0_i32_0 = arith.constant 0 : i32
    %c0_i32_1 = arith.constant 0 : i32
    return %c0_i32, %c0_i32_0 : i32, i32
  }
  func.func @transform_9(%arg0: i32, %arg1: i32, %arg2: i32) -> (i32, i32) {
    %c0_i32 = arith.constant 0 : i32
    %c0_i32_0 = arith.constant 0 : i32
    return %c0_i32, %arg2 : i32, i32
  }
  func.func @transform_10(%arg0: i32, %arg1: i32, %arg2: i32) -> (i32, i32) {
    %c0_i32 = arith.constant 0 : i32
    %c0_i32_0 = arith.constant 0 : i32
    return %c0_i32, %arg2 : i32, i32
  }
  func.func @transform_11(%arg0: i32, %arg1: i32, %arg2: i32) -> (i32, i32) {
    %c0_i32 = arith.constant 0 : i32
    %c0_i32_0 = arith.constant 0 : i32
    return %arg2, %c0_i32 : i32, i32
  }
  func.func @transform_12(%arg0: i32, %arg1: i32, %arg2: i32) -> (i32, i32) {
    %c0_i32 = arith.constant 0 : i32
    %c0_i32_0 = arith.constant 0 : i32
    %c0_i32_1 = arith.constant 0 : i32
    return %c0_i32, %c0_i32_0 : i32, i32
  }
  func.func @transform_13(%arg0: i32, %arg1: i32, %arg2: i32) -> (i32, i32) {
    %c0_i32 = arith.constant 0 : i32
    %c0_i32_0 = arith.constant 0 : i32
    %c0_i32_1 = arith.constant 0 : i32
    return %c0_i32, %c0_i32_0 : i32, i32
  }
  func.func @transform_14(%arg0: i32, %arg1: i32, %arg2: i32) -> (i32, i32) {
    %c0_i32 = arith.constant 0 : i32
    %c0_i32_0 = arith.constant 0 : i32
    %c0_i32_1 = arith.constant 0 : i32
    return %c0_i32, %c0_i32_0 : i32, i32
  }
  func.func @transform_15(%arg0: i32, %arg1: i32, %arg2: i32) -> (i32, i32) {
    %c0_i32 = arith.constant 0 : i32
    %c0_i32_0 = arith.constant 0 : i32
    %c0_i32_1 = arith.constant 0 : i32
    return %c0_i32, %c0_i32_0 : i32, i32
  }
  func.func @transform_16(%arg0: i32, %arg1: i32, %arg2: i32) -> (i32, i32, i32) {
    %c0_i32 = arith.constant 0 : i32
    %c0_i32_0 = arith.constant 0 : i32
    return %arg0, %arg1, %c0_i32 : i32, i32, i32
  }
}

</mosaic_0001>

<llo_original>
// kernel: tpu_custom_call.1
$region0: #{tpu_custom_call.1}
  #allocation0 [shape = 'u32[]', space=smem, size = 0x4, offset = 0x4, fixed_abs, tag = 'smem constant byte address 0x4 - core index']
  #allocation1 [shape = 'u32[144,128]{1,0:T(1,128)}', space=vmem, size = 0x12000, scoped, tag = 'internal scratch']
  #allocation2 [shape = 'f32[16,128]{1,0:T(8,128)}', space=vmem, size = 0x2000, scoped, tag = 'scratch operand']
  #allocation3 [shape = 'bf16[16,256]{1,0:T(16,128)(2,1)}', space=vmem, size = 0x2000, scoped, tag = 'scratch operand']
  #allocation4 [shape = 'bf16[8,128]{1,0:T(8,128)(2,1)}', space=vmem, size = 0x800, scoped, tag = 'scratch operand']
  #allocation5 [shape = 'f32[8,128]{1,0:T(8,128)}', space=vmem, size = 0x1000, scoped, tag = 'scratch operand']
  #allocation6 [shape = 's32[1]{0}', space=sflag, size = 0x4, scoped, tag = 'scratch operand']
  #allocation20 [shape = 's32[]', space=sflag, size = 0x4, offset = 0, fixed_abs, tag = 'sflag constant byte address 0x0 - dummy sync flag']
  #allocation21 [shape = 's32[]', space=sflag, size = 0x4, offset = 0, fixed_abs, tag = 'sflag constant byte address 0x0 - dummy sync flag']
  #allocation22 [shape = 'u32[]', space=smem, size = 0x4, offset = 0x44, fixed_abs, tag = 'smem constant byte address 0x44 - assertion arg 0']
  #allocation23 [shape = 'u32[]', space=smem, size = 0x4, offset = 0x48, fixed_abs, tag = 'smem constant byte address 0x48 - assertion arg 1']
  %s0 = inlined_call_operand.hbm [shape: f32[2,16,128], index: 0, kind: input, shape index: {}]
  %s1 = inlined_call_operand.hbm [shape: f32[2,16,128], index: 1, kind: input, shape index: {}]
  %s2 = inlined_call_operand.vmem [shape: f32[1,128], index: 2, kind: input, shape index: {}]
  %s3 = inlined_call_operand.vmem [shape: f32[1,128], index: 3, kind: input, shape index: {}]
  %s4 = inlined_call_operand.vmem [shape: f32[1,128], index: 4, kind: input, shape index: {}]
  %s5 = inlined_call_operand.vmem [shape: f32[1,128], index: 5, kind: input, shape index: {}]
  %s6 = inlined_call_operand.hbm [shape: bf16[128,256], index: 6, kind: input, shape index: {}]
  %s7 = inlined_call_operand.hbm [shape: bf16[128,256], index: 7, kind: input, shape index: {}]
  %s8 = inlined_call_operand.hbm [shape: bf16[256,128], index: 8, kind: input, shape index: {}]
  %s9 = inlined_call_operand.hbm [shape: bf16[128,512], index: 9, kind: input, shape index: {}]
  %s10 = inlined_call_operand.hbm [shape: bf16[128,512], index: 10, kind: input, shape index: {}]
  %s11 = inlined_call_operand.hbm [shape: bf16[512,128], index: 11, kind: input, shape index: {}]
  %s12 = inlined_call_operand.vmem [shape: f32[1,128], index: 12, kind: input, shape index: {}]
  %s13 = inlined_call_operand.vmem [shape: f32[1,128], index: 13, kind: input, shape index: {}]
  %s14 = inlined_call_operand.hbm [shape: bf16[128,128], index: 14, kind: input, shape index: {}]
  %s15 = inlined_call_operand.vmem [shape: f32[1,128], index: 15, kind: input, shape index: {}]
  %s16 = inlined_call_operand.hbm [shape: f32[2,16,128], index: 16, kind: output, shape index: {}]
  %s17 = sld [smem:[#allocation0]]
  $region141: #{tpu_custom_call.1} parent=0
    _
  %s19 = ssub.s32 1, %s17
  %s20 = scalar_select 0, %s19, %s17
  $region1: #{tpu_custom_call.1} parent=0
    #allocation7 [shape = 'u8[8192]{0}', space=vmem, size = 0x2000, scoped, tag = 'input window, operand 0']
    #allocation8 [shape = 's32[2]{0}', space=sflag, size = 0x8, scoped, tag = 'scoped memory for tpu_custom_call.1']
    #allocation9 [shape = 's32[2]{0}', space=sflag, size = 0x8, scoped, tag = 'scoped memory for tpu_custom_call.1']
    #allocation10 [shape = 'u8[65536]{0}', space=vmem, size = 0x10000, scoped, tag = 'input window, operand 6, single buffered']
    #allocation11 [shape = 's32[1]{0}', space=sflag, size = 0x4, scoped, tag = 'scoped memory for tpu_custom_call.1']
    #allocation12 [shape = 'u8[65536]{0}', space=vmem, size = 0x10000, scoped, tag = 'input window, operand 7, single buffered']
    #allocation13 [shape = 'u8[65536]{0}', space=vmem, size = 0x10000, scoped, tag = 'input window, operand 8, single buffered']
    #allocation14 [shape = 's32[1]{0}', space=sflag, size = 0x4, scoped, tag = 'scoped memory for tpu_custom_call.1']
    #allocation15 [shape = 'u8[131072]{0}', space=vmem, size = 0x20000, scoped, tag = 'input window, operand 9']
    #allocation16 [shape = 'u8[131072]{0}', space=vmem, size = 0x20000, scoped, tag = 'input window, operand 10']
    #allocation17 [shape = 'u8[131072]{0}', space=vmem, size = 0x20000, scoped, tag = 'input window, operand 11']
    #allocation18 [shape = 'u8[32768]{0}', space=vmem, size = 0x8000, scoped, tag = 'input window, operand 14, single buffered']
    #allocation19 [shape = 'u8[8192]{0}', space=vmem, size = 0x2000, scoped, tag = 'output window, operand 0']
    %21 = vsyncpa [#allocation8], 0
    %s22 = scalar_lea.sflag [#allocation8], 1
    %23 = vsyncpa %s22, 0
    %24 = vsyncpa [#allocation11], 0
    %25 = vsyncpa [#allocation14], 0
    %26 = vsyncpa [#allocation9], 0
    %s27 = scalar_lea.sflag [#allocation9], 1
    %28 = vsyncpa %s27, 0
    loop: start=0, step=1, limit=10
    $region2: #{tpu_custom_call.1} parent=1 // loop_pre_header
      _
    $region3: #{tpu_custom_call.1} parent=1 // loop_header
      %s30 = sphi 0, %s34
      %p31 = scmp.ge.s32.totalorder %s30, 10
      %s37 = sphi 0, %s56
      %s38 = sphi 0, %s52
      %s39 = sphi 0, %s48
      %s40 = sphi 0, %s37
      %s41 = sphi 0, %s38
      %s42 = sphi 0, %s39
      %s43 = sphi 0, %s40
      %s44 = sphi 0, %s41
      %s45 = sphi 0, %s42
      %s61 = sphi 0, %s63
      %s64 = sphi 0, %s61
      %s65 = sphi 0, %s64
      %s81 = sphi 0, %s65
      %s85 = sphi 0, %s85
      %s87 = sphi 0, %s85
      %s88 = sphi 0, %s87
      %s102 = sphi 0, %s88
      %s106 = sphi 0, %s106
      %s108 = sphi 0, %s106
      %s109 = sphi 0, %s108
      %s123 = sphi 0, %s109
      %s127 = sphi 0, %s127
      %s129 = sphi 0, %s127
      %s130 = sphi 0, %s129
      %s144 = sphi 0, %s130
      %s148 = sphi 0, %s148
      %s150 = sphi 0, %s148
      %s151 = sphi 0, %s150
      %s165 = sphi 0, %s151
      %s169 = sphi 0, %s169
      %s171 = sphi 0, %s169
      %s172 = sphi 0, %s171
      %s186 = sphi 0, %s172
      %s190 = sphi 0, %s190
      %s192 = sphi 0, %s190
      %s193 = sphi 0, %s192
      %s207 = sphi 0, %s193
      %s211 = sphi 0, %s211
      %s213 = sphi 0, %s211
      %s214 = sphi 0, %s213
      %s228 = sphi 0, %s214
      %s234 = sphi 0, %s236
      %s237 = sphi 0, %s234
      %s238 = sphi 0, %s237
      %s254 = sphi 0, %s238
      %s260 = sphi 0, %s262
      %s263 = sphi 0, %s260
      %s264 = sphi 0, %s263
      %s280 = sphi 0, %s264
      %s286 = sphi 0, %s288
      %s289 = sphi 0, %s286
      %s290 = sphi 0, %s289
      %s306 = sphi 0, %s290
      %s310 = sphi 0, %s310
      %s312 = sphi 0, %s310
      %s313 = sphi 0, %s312
      %s327 = sphi 0, %s313
      %s331 = sphi 0, %s331
      %s333 = sphi 0, %s331
      %s334 = sphi 0, %s333
      %s348 = sphi 0, %s334
      %s352 = sphi 0, %s352
      %s354 = sphi 0, %s352
      %s355 = sphi 0, %s354
      %s369 = sphi 0, %s355
      %s373 = sphi 0, %s373
      %s375 = sphi 0, %s373
      %s376 = sphi 0, %s375
      %s390 = sphi 0, %s376
      %s398 = sphi 0, %s400
      %s401 = sphi 0, %s398
      %s402 = sphi 0, %s401
      %s418 = sphi 0, %s402
    $region4: #{tpu_custom_call.1} parent=1 // loop_header_branch
      %33 = sbr.rel (%p31) target = $region8
    $region5: #{tpu_custom_call.1} parent=1 // loop_body
      %s35 = ssub.s32 %s30, 1
      %s36 = ssub.s32 %s30, 2
      %s46 = sadd.s32 1, %s39
      %p47 = scmp.ge.s32.totalorder %s46, 2
      %s48 = scalar_select %p47, 0, %s46
      %s49 = sadd.s32 1, %s38
      %s50 = scalar_select %p47, %s49, %s38
      %p51 = scmp.ge.s32.totalorder %s50, 2
      %s52 = scalar_select %p51, 0, %s50
      %s53 = sadd.s32 1, %s37
      %s54 = scalar_select %p51, %s53, %s37
      %p55 = scmp.ge.s32.totalorder %s54, 2
      %s56 = scalar_select %p55, 0, %s54
      %s57 = ssub.s32 %s37, %s56
      %s58 = ssub.s32 %s38, %s52
      %s59 = sor.u32 %s57, %s58
      %p60 = scmp.eq.s32.totalorder %s59, 0
      %s62 = sadd.s32 %s61, 1
      %s63 = scalar_select %p60, %s61, %s62
      %p66 = pneg %p60
      %p67 = scmp.eq.s32.totalorder %s30, 7
      %p68 = por %p66, %p67
      %p69 = scmp.ne.s32.totalorder %s61, %s64
      %p70 = scmp.eq.s32.totalorder %s30, 0
      %p71 = por %p69, %p70
      %p72 = scmp.ne.s32.totalorder %s61, %s64
      %p73 = scmp.eq.s32.totalorder %s35, 7
      %p74 = por %p72, %p73
      %p75 = scmp.ne.s32.totalorder %s64, %s65
      %p76 = scmp.eq.s32.totalorder %s35, 0
      %p77 = por %p75, %p76
      %p78 = scmp.ne.s32.totalorder %s64, %s65
      %p79 = scmp.eq.s32.totalorder %s36, 7
      %p80 = por %p78, %p79
      %p82 = scmp.ne.s32.totalorder %s65, %s81
      %p83 = scmp.eq.s32.totalorder %s36, 0
      %p84 = por %p82, %p83
      %s86 = sadd.s32 %s85, 1
      %p89 = scmp.eq.s32.totalorder %s30, 7
      %p90 = scmp.ne.s32.totalorder %s85, %s87
      %p91 = scmp.eq.s32.totalorder %s30, 0
      %p92 = por %p90, %p91
      %p93 = scmp.ne.s32.totalorder %s85, %s87
      %p94 = scmp.eq.s32.totalorder %s35, 7
      %p95 = por %p93, %p94
      %p96 = scmp.ne.s32.totalorder %s87, %s88
      %p97 = scmp.eq.s32.totalorder %s35, 0
      %p98 = por %p96, %p97
      %p99 = scmp.ne.s32.totalorder %s87, %s88
      %p100 = scmp.eq.s32.totalorder %s36, 7
      %p101 = por %p99, %p100
      %p103 = scmp.ne.s32.totalorder %s88, %s102
      %p104 = scmp.eq.s32.totalorder %s36, 0
      %p105 = por %p103, %p104
      %s107 = sadd.s32 %s106, 1
      %p110 = scmp.eq.s32.totalorder %s30, 7
      %p111 = scmp.ne.s32.totalorder %s106, %s108
      %p112 = scmp.eq.s32.totalorder %s30, 0
      %p113 = por %p111, %p112
      %p114 = scmp.ne.s32.totalorder %s106, %s108
      %p115 = scmp.eq.s32.totalorder %s35, 7
      %p116 = por %p114, %p115
      %p117 = scmp.ne.s32.totalorder %s108, %s109
      %p118 = scmp.eq.s32.totalorder %s35, 0
      %p119 = por %p117, %p118
      %p120 = scmp.ne.s32.totalorder %s108, %s109
      %p121 = scmp.eq.s32.totalorder %s36, 7
      %p122 = por %p120, %p121
      %p124 = scmp.ne.s32.totalorder %s109, %s123
      %p125 = scmp.eq.s32.totalorder %s36, 0
      %p126 = por %p124, %p125
      %s128 = sadd.s32 %s127, 1
      %p131 = scmp.eq.s32.totalorder %s30, 7
      %p132 = scmp.ne.s32.totalorder %s127, %s129
      %p133 = scmp.eq.s32.totalorder %s30, 0
      %p134 = por %p132, %p133
      %p135 = scmp.ne.s32.totalorder %s127, %s129
      %p136 = scmp.eq.s32.totalorder %s35, 7
      %p137 = por %p135, %p136
      %p138 = scmp.ne.s32.totalorder %s129, %s130
      %p139 = scmp.eq.s32.totalorder %s35, 0
      %p140 = por %p138, %p139
      %p141 = scmp.ne.s32.totalorder %s129, %s130
      %p142 = scmp.eq.s32.totalorder %s36, 7
      %p143 = por %p141, %p142
      %p145 = scmp.ne.s32.totalorder %s130, %s144
      %p146 = scmp.eq.s32.totalorder %s36, 0
      %p147 = por %p145, %p146
      %s149 = sadd.s32 %s148, 1
      %p152 = scmp.eq.s32.totalorder %s30, 7
      %p153 = scmp.ne.s32.totalorder %s148, %s150
      %p154 = scmp.eq.s32.totalorder %s30, 0
      %p155 = por %p153, %p154
      %p156 = scmp.ne.s32.totalorder %s148, %s150
      %p157 = scmp.eq.s32.totalorder %s35, 7
      %p158 = por %p156, %p157
      %p159 = scmp.ne.s32.totalorder %s150, %s151
      %p160 = scmp.eq.s32.totalorder %s35, 0
      %p161 = por %p159, %p160
      %p162 = scmp.ne.s32.totalorder %s150, %s151
      %p163 = scmp.eq.s32.totalorder %s36, 7
      %p164 = por %p162, %p163
      %p166 = scmp.ne.s32.totalorder %s151, %s165
      %p167 = scmp.eq.s32.totalorder %s36, 0
      %p168 = por %p166, %p167
      %s170 = sadd.s32 %s169, 1
      %p173 = scmp.eq.s32.totalorder %s30, 7
      %p174 = scmp.ne.s32.totalorder %s169, %s171
      %p175 = scmp.eq.s32.totalorder %s30, 0
      %p176 = por %p174, %p175
      %p177 = scmp.ne.s32.totalorder %s169, %s171
      %p178 = scmp.eq.s32.totalorder %s35, 7
      %p179 = por %p177, %p178
      %p180 = scmp.ne.s32.totalorder %s171, %s172
      %p181 = scmp.eq.s32.totalorder %s35, 0
      %p182 = por %p180, %p181
      %p183 = scmp.ne.s32.totalorder %s171, %s172
      %p184 = scmp.eq.s32.totalorder %s36, 7
      %p185 = por %p183, %p184
      %p187 = scmp.ne.s32.totalorder %s172, %s186
      %p188 = scmp.eq.s32.totalorder %s36, 0
      %p189 = por %p187, %p188
      %s191 = sadd.s32 %s190, 1
      %p194 = scmp.eq.s32.totalorder %s30, 7
      %p195 = scmp.ne.s32.totalorder %s190, %s192
      %p196 = scmp.eq.s32.totalorder %s30, 0
      %p197 = por %p195, %p196
      %p198 = scmp.ne.s32.totalorder %s190, %s192
      %p199 = scmp.eq.s32.totalorder %s35, 7
      %p200 = por %p198, %p199
      %p201 = scmp.ne.s32.totalorder %s192, %s193
      %p202 = scmp.eq.s32.totalorder %s35, 0
      %p203 = por %p201, %p202
      %p204 = scmp.ne.s32.totalorder %s192, %s193
      %p205 = scmp.eq.s32.totalorder %s36, 7
      %p206 = por %p204, %p205
      %p208 = scmp.ne.s32.totalorder %s193, %s207
      %p209 = scmp.eq.s32.totalorder %s36, 0
      %p210 = por %p208, %p209
      %s212 = sadd.s32 %s211, 1
      %p215 = scmp.eq.s32.totalorder %s30, 7
      %p216 = scmp.ne.s32.totalorder %s211, %s213
      %p217 = scmp.eq.s32.totalorder %s30, 0
      %p218 = por %p216, %p217
      %p219 = scmp.ne.s32.totalorder %s211, %s213
      %p220 = scmp.eq.s32.totalorder %s35, 7
      %p221 = por %p219, %p220
      %p222 = scmp.ne.s32.totalorder %s213, %s214
      %p223 = scmp.eq.s32.totalorder %s35, 0
      %p224 = por %p222, %p223
      %p225 = scmp.ne.s32.totalorder %s213, %s214
      %p226 = scmp.eq.s32.totalorder %s36, 7
      %p227 = por %p225, %p226
      %p229 = scmp.ne.s32.totalorder %s214, %s228
      %p230 = scmp.eq.s32.totalorder %s36, 0
      %p231 = por %p229, %p230
      %s232 = ssub.s32 %s39, %s48
      %p233 = scmp.eq.s32.totalorder %s232, 0
      %s235 = sadd.s32 %s234, 1
      %s236 = scalar_select %p233, %s234, %s235
      %p239 = pneg %p233
      %p240 = scmp.eq.s32.totalorder %s30, 7
      %p241 = por %p239, %p240
      %p242 = scmp.ne.s32.totalorder %s234, %s237
      %p243 = scmp.eq.s32.totalorder %s30, 0
      %p244 = por %p242, %p243
      %p245 = scmp.ne.s32.totalorder %s234, %s237
      %p246 = scmp.eq.s32.totalorder %s35, 7
      %p247 = por %p245, %p246
      %p248 = scmp.ne.s32.totalorder %s237, %s238
      %p249 = scmp.eq.s32.totalorder %s35, 0
      %p250 = por %p248, %p249
      %p251 = scmp.ne.s32.totalorder %s237, %s238
      %p252 = scmp.eq.s32.totalorder %s36, 7
      %p253 = por %p251, %p252
      %p255 = scmp.ne.s32.totalorder %s238, %s254
      %p256 = scmp.eq.s32.totalorder %s36, 0
      %p257 = por %p255, %p256
      %s258 = ssub.s32 %s39, %s48
      %p259 = scmp.eq.s32.totalorder %s258, 0
      %s261 = sadd.s32 %s260, 1
      %s262 = scalar_select %p259, %s260, %s261
      %p265 = pneg %p259
      %p266 = scmp.eq.s32.totalorder %s30, 7
      %p267 = por %p265, %p266
      %p268 = scmp.ne.s32.totalorder %s260, %s263
      %p269 = scmp.eq.s32.totalorder %s30, 0
      %p270 = por %p268, %p269
      %p271 = scmp.ne.s32.totalorder %s260, %s263
      %p272 = scmp.eq.s32.totalorder %s35, 7
      %p273 = por %p271, %p272
      %p274 = scmp.ne.s32.totalorder %s263, %s264
      %p275 = scmp.eq.s32.totalorder %s35, 0
      %p276 = por %p274, %p275
      %p277 = scmp.ne.s32.totalorder %s263, %s264
      %p278 = scmp.eq.s32.totalorder %s36, 7
      %p279 = por %p277, %p278
      %p281 = scmp.ne.s32.totalorder %s264, %s280
      %p282 = scmp.eq.s32.totalorder %s36, 0
      %p283 = por %p281, %p282
      %s284 = ssub.s32 %s39, %s48
      %p285 = scmp.eq.s32.totalorder %s284, 0
      %s287 = sadd.s32 %s286, 1
      %s288 = scalar_select %p285, %s286, %s287
      %p291 = pneg %p285
      %p292 = scmp.eq.s32.totalorder %s30, 7
      %p293 = por %p291, %p292
      %p294 = scmp.ne.s32.totalorder %s286, %s289
      %p295 = scmp.eq.s32.totalorder %s30, 0
      %p296 = por %p294, %p295
      %p297 = scmp.ne.s32.totalorder %s286, %s289
      %p298 = scmp.eq.s32.totalorder %s35, 7
      %p299 = por %p297, %p298
      %p300 = scmp.ne.s32.totalorder %s289, %s290
      %p301 = scmp.eq.s32.totalorder %s35, 0
      %p302 = por %p300, %p301
      %p303 = scmp.ne.s32.totalorder %s289, %s290
      %p304 = scmp.eq.s32.totalorder %s36, 7
      %p305 = por %p303, %p304
      %p307 = scmp.ne.s32.totalorder %s290, %s306
      %p308 = scmp.eq.s32.totalorder %s36, 0
      %p309 = por %p307, %p308
      %s311 = sadd.s32 %s310, 1
      %p314 = scmp.eq.s32.totalorder %s30, 7
      %p315 = scmp.ne.s32.totalorder %s310, %s312
      %p316 = scmp.eq.s32.totalorder %s30, 0
      %p317 = por %p315, %p316
      %p318 = scmp.ne.s32.totalorder %s310, %s312
      %p319 = scmp.eq.s32.totalorder %s35, 7
      %p320 = por %p318, %p319
      %p321 = scmp.ne.s32.totalorder %s312, %s313
      %p322 = scmp.eq.s32.totalorder %s35, 0
      %p323 = por %p321, %p322
      %p324 = scmp.ne.s32.totalorder %s312, %s313
      %p325 = scmp.eq.s32.totalorder %s36, 7
      %p326 = por %p324, %p325
      %p328 = scmp.ne.s32.totalorder %s313, %s327
      %p329 = scmp.eq.s32.totalorder %s36, 0
      %p330 = por %p328, %p329
      %s332 = sadd.s32 %s331, 1
      %p335 = scmp.eq.s32.totalorder %s30, 7
      %p336 = scmp.ne.s32.totalorder %s331, %s333
      %p337 = scmp.eq.s32.totalorder %s30, 0
      %p338 = por %p336, %p337
      %p339 = scmp.ne.s32.totalorder %s331, %s333
      %p340 = scmp.eq.s32.totalorder %s35, 7
      %p341 = por %p339, %p340
      %p342 = scmp.ne.s32.totalorder %s333, %s334
      %p343 = scmp.eq.s32.totalorder %s35, 0
      %p344 = por %p342, %p343
      %p345 = scmp.ne.s32.totalorder %s333, %s334
      %p346 = scmp.eq.s32.totalorder %s36, 7
      %p347 = por %p345, %p346
      %p349 = scmp.ne.s32.totalorder %s334, %s348
      %p350 = scmp.eq.s32.totalorder %s36, 0
      %p351 = por %p349, %p350
      %s353 = sadd.s32 %s352, 1
      %p356 = scmp.eq.s32.totalorder %s30, 7
      %p357 = scmp.ne.s32.totalorder %s352, %s354
      %p358 = scmp.eq.s32.totalorder %s30, 0
      %p359 = por %p357, %p358
      %p360 = scmp.ne.s32.totalorder %s352, %s354
      %p361 = scmp.eq.s32.totalorder %s35, 7
      %p362 = por %p360, %p361
      %p363 = scmp.ne.s32.totalorder %s354, %s355
      %p364 = scmp.eq.s32.totalorder %s35, 0
      %p365 = por %p363, %p364
      %p366 = scmp.ne.s32.totalorder %s354, %s355
      %p367 = scmp.eq.s32.totalorder %s36, 7
      %p368 = por %p366, %p367
      %p370 = scmp.ne.s32.totalorder %s355, %s369
      %p371 = scmp.eq.s32.totalorder %s36, 0
      %p372 = por %p370, %p371
      %s374 = sadd.s32 %s373, 1
      %p377 = scmp.eq.s32.totalorder %s30, 7
      %p378 = scmp.ne.s32.totalorder %s373, %s375
      %p379 = scmp.eq.s32.totalorder %s30, 0
      %p380 = por %p378, %p379
      %p381 = scmp.ne.s32.totalorder %s373, %s375
      %p382 = scmp.eq.s32.totalorder %s35, 7
      %p383 = por %p381, %p382
      %p384 = scmp.ne.s32.totalorder %s375, %s376
      %p385 = scmp.eq.s32.totalorder %s35, 0
      %p386 = por %p384, %p385
      %p387 = scmp.ne.s32.totalorder %s375, %s376
      %p388 = scmp.eq.s32.totalorder %s36, 7
      %p389 = por %p387, %p388
      %p391 = scmp.ne.s32.totalorder %s376, %s390
      %p392 = scmp.eq.s32.totalorder %s36, 0
      %p393 = por %p391, %p392
      %s394 = ssub.s32 %s37, %s56
      %s395 = ssub.s32 %s38, %s52
      %s396 = sor.u32 %s394, %s395
      %p397 = scmp.eq.s32.totalorder %s396, 0
      %s399 = sadd.s32 %s398, 1
      %s400 = scalar_select %p397, %s398, %s399
      %p403 = pneg %p397
      %p404 = scmp.eq.s32.totalorder %s30, 7
      %p405 = por %p403, %p404
      %p406 = scmp.ne.s32.totalorder %s398, %s401
      %p407 = scmp.eq.s32.totalorder %s30, 0
      %p408 = por %p406, %p407
      %p409 = scmp.ne.s32.totalorder %s398, %s401
      %p410 = scmp.eq.s32.totalorder %s35, 7
      %p411 = por %p409, %p410
      %p412 = scmp.ne.s32.totalorder %s401, %s402
      %p413 = scmp.eq.s32.totalorder %s35, 0
      %p414 = por %p412, %p413
      %p415 = scmp.ne.s32.totalorder %s401, %s402
      %p416 = scmp.eq.s32.totalorder %s36, 7
      %p417 = por %p415, %p416
      %p419 = scmp.ne.s32.totalorder %s402, %s418
      %p420 = scmp.eq.s32.totalorder %s36, 0
      %p421 = por %p419, %p420
      %p422 = scmp.le.s32.totalorder 1, %s30
      %p423 = scmp.lt.s32.totalorder %s30, 9
      %p424 = pnand %p422, %p423
      %p425 = pneg %p424
      // Predicated region
      $region9: #{tpu_custom_call.1} parent=5 // pred_check
        _
      $region10: #{tpu_custom_call.1} parent=5 // pred_check_branch
        %427 = sbr.rel (%p424) target = $region12
      $region11: #{tpu_custom_call.1} parent=5 // pred_region
        %s428 = ssub.s32 %s30, 1
        // Predicated region
        $region13: #{tpu_custom_call.1} parent=11 // pred_check
          %p429 = pneg %p98
        $region14: #{tpu_custom_call.1} parent=11 // pred_check_branch
          %431 = sbr.rel (%p429) target = $region16
        $region15: #{tpu_custom_call.1} parent=11 // pred_region
          _
        $region16: #{tpu_custom_call.1} parent=11 // pred_fallthru
          _
        // Predicated region
        $region17: #{tpu_custom_call.1} parent=11 // pred_check
          %p432 = pneg %p119
        $region18: #{tpu_custom_call.1} parent=11 // pred_check_branch
          %434 = sbr.rel (%p432) target = $region20
        $region19: #{tpu_custom_call.1} parent=11 // pred_region
          _
        $region20: #{tpu_custom_call.1} parent=11 // pred_fallthru
          _
        // Predicated region
        $region21: #{tpu_custom_call.1} parent=11 // pred_check
          %p435 = pneg %p140
        $region22: #{tpu_custom_call.1} parent=11 // pred_check_branch
          %437 = sbr.rel (%p435) target = $region24
        $region23: #{tpu_custom_call.1} parent=11 // pred_region
          _
        $region24: #{tpu_custom_call.1} parent=11 // pred_fallthru
          _
        // Predicated region
        $region25: #{tpu_custom_call.1} parent=11 // pred_check
          %p438 = pneg %p161
        $region26: #{tpu_custom_call.1} parent=11 // pred_check_branch
          %440 = sbr.rel (%p438) target = $region28
        $region27: #{tpu_custom_call.1} parent=11 // pred_region
          _
        $region28: #{tpu_custom_call.1} parent=11 // pred_fallthru
          _
        // Predicated region
        $region29: #{tpu_custom_call.1} parent=11 // pred_check
          %p441 = pneg %p182
        $region30: #{tpu_custom_call.1} parent=11 // pred_check_branch
          %443 = sbr.rel (%p441) target = $region32
        $region31: #{tpu_custom_call.1} parent=11 // pred_region
          %s445 = ssub.s32 2048, 2048
          %446 = vsyncadd [#allocation11], %s445
          %s447 = sshll.u32 [#allocation10], 4
          %s448 = int_to_ptr.vmem [resolvable:$true] %s447
          %453 = dma.hbm_to_vmem [thread:$0]  %s6, 2048, %s448, [#allocation11], 128, 128, 8
        $region32: #{tpu_custom_call.1} parent=11 // pred_fallthru
          _
        // Predicated region
        $region33: #{tpu_custom_call.1} parent=11 // pred_check
          %p454 = pneg %p203
        $region34: #{tpu_custom_call.1} parent=11 // pred_check_branch
          %456 = sbr.rel (%p454) target = $region36
        $region35: #{tpu_custom_call.1} parent=11 // pred_region
          %s458 = ssub.s32 2048, 2048
          %459 = vsyncadd [#allocation11], %s458
          %s460 = sshll.u32 [#allocation12], 4
          %s461 = int_to_ptr.vmem [resolvable:$true] %s460
          %466 = dma.hbm_to_vmem [thread:$0]  %s7, 2048, %s461, [#allocation11], 128, 128, 8
        $region36: #{tpu_custom_call.1} parent=11 // pred_fallthru
          _
        // Predicated region
        $region37: #{tpu_custom_call.1} parent=11 // pred_check
          %p467 = pneg %p224
        $region38: #{tpu_custom_call.1} parent=11 // pred_check_branch
          %469 = sbr.rel (%p467) target = $region40
        $region39: #{tpu_custom_call.1} parent=11 // pred_region
          %s471 = ssub.s32 2048, 2048
          %472 = vsyncadd [#allocation14], %s471
          %s473 = sshll.u32 [#allocation13], 4
          %s474 = int_to_ptr.vmem [resolvable:$true] %s473
          %479 = dma.hbm_to_vmem [thread:$0]  %s8, 2048, %s474, [#allocation14], 64, 64, 4
        $region40: #{tpu_custom_call.1} parent=11 // pred_fallthru
          _
        // Predicated region
        $region41: #{tpu_custom_call.1} parent=11 // pred_check
          %p480 = pneg %p323
        $region42: #{tpu_custom_call.1} parent=11 // pred_check_branch
          %482 = sbr.rel (%p480) target = $region44
        $region43: #{tpu_custom_call.1} parent=11 // pred_region
          _
        $region44: #{tpu_custom_call.1} parent=11 // pred_fallthru
          _
        // Predicated region
        $region45: #{tpu_custom_call.1} parent=11 // pred_check
          %p483 = pneg %p344
        $region46: #{tpu_custom_call.1} parent=11 // pred_check_branch
          %485 = sbr.rel (%p483) target = $region48
        $region47: #{tpu_custom_call.1} parent=11 // pred_region
          _
        $region48: #{tpu_custom_call.1} parent=11 // pred_fallthru
          _
        // Predicated region
        $region49: #{tpu_custom_call.1} parent=11 // pred_check
          %p486 = pneg %p365
        $region50: #{tpu_custom_call.1} parent=11 // pred_check_branch
          %488 = sbr.rel (%p486) target = $region52
        $region51: #{tpu_custom_call.1} parent=11 // pred_region
          %s490 = ssub.s32 1024, 1024
          %491 = vsyncadd [#allocation11], %s490
          %s492 = sshll.u32 [#allocation18], 4
          %s493 = int_to_ptr.vmem [resolvable:$true] %s492
          %498 = dma.hbm_to_vmem [thread:$0]  %s14, 1024, %s493, [#allocation11], 64, 64, 4
        $region52: #{tpu_custom_call.1} parent=11 // pred_fallthru
          _
        // Predicated region
        $region53: #{tpu_custom_call.1} parent=11 // pred_check
          %p499 = pneg %p386
        $region54: #{tpu_custom_call.1} parent=11 // pred_check_branch
          %501 = sbr.rel (%p499) target = $region56
        $region55: #{tpu_custom_call.1} parent=11 // pred_region
          _
        $region56: #{tpu_custom_call.1} parent=11 // pred_fallthru
          _
      $region12: #{tpu_custom_call.1} parent=5 // pred_fallthru
        _
      %p502 = scmp.lt.s32.totalorder %s30, 8
      // Predicated region
      $region57: #{tpu_custom_call.1} parent=5 // pred_check
        %p503 = pneg %p502
      $region58: #{tpu_custom_call.1} parent=5 // pred_check_branch
        %505 = sbr.rel (%p503) target = $region60
      $region59: #{tpu_custom_call.1} parent=5 // pred_region
        // Predicated region
        $region61: #{tpu_custom_call.1} parent=59 // pred_check
          %p506 = pneg %p71
        $region62: #{tpu_custom_call.1} parent=59 // pred_check_branch
          %508 = sbr.rel (%p506) target = $region64
        $region63: #{tpu_custom_call.1} parent=59 // pred_region
          %s509 = sand.u32 %s30, 1
          %s510 = scalar_lea.sflag [#allocation8], %s509
          %s511 = sand.u32 %s61, 1
          %s512 = smul.addr %s511, 8
          %s513 = scalar_lea.vmem [#allocation7], %s512
          %s515 = ssub.s32 128, 128
          %516 = vsyncadd %s510, %s515
          %s517 = smul.addr %s37, 2
          %s518 = sadd.s32 %s38, %s517
          %s519 = smul.addr %s518, 128
          %s520 = scalar_lea.hbm %s0, %s519
          %s522 = sshll.u32 %s513, 4
          %s523 = int_to_ptr.vmem [resolvable:$true] %s522
          %525 = dma.hbm_to_vmem [thread:$0]  %s520, 128, %s523, %s510
        $region64: #{tpu_custom_call.1} parent=59 // pred_fallthru
          _
        // Predicated region
        $region65: #{tpu_custom_call.1} parent=59 // pred_check
          %p526 = pneg %p244
        $region66: #{tpu_custom_call.1} parent=59 // pred_check_branch
          %528 = sbr.rel (%p526) target = $region68
        $region67: #{tpu_custom_call.1} parent=59 // pred_region
          %s529 = sand.u32 %s30, 1
          %s530 = scalar_lea.sflag [#allocation8], %s529
          %s531 = sand.u32 %s234, 1
          %s532 = smul.addr %s531, 128
          %s533 = scalar_lea.vmem [#allocation15], %s532
          %s534 = smul.u32 2, %s39
          %s536 = ssub.s32 2048, 2048
          %537 = vsyncadd %s530, %s536
          %s538 = smul.addr %s534, 64
          %s539 = scalar_lea.hbm %s9, %s538
          %s540 = sshll.u32 %s533, 4
          %s541 = int_to_ptr.vmem [resolvable:$true] %s540
          %546 = dma.hbm_to_vmem [thread:$0]  %s539, 2048, %s541, %s530, 256, 128, 8
        $region68: #{tpu_custom_call.1} parent=59 // pred_fallthru
          _
        // Predicated region
        $region69: #{tpu_custom_call.1} parent=59 // pred_check
          %p547 = pneg %p270
        $region70: #{tpu_custom_call.1} parent=59 // pred_check_branch
          %549 = sbr.rel (%p547) target = $region72
        $region71: #{tpu_custom_call.1} parent=59 // pred_region
          %s550 = sand.u32 %s30, 1
          %s551 = scalar_lea.sflag [#allocation8], %s550
          %s552 = sand.u32 %s260, 1
          %s553 = smul.addr %s552, 128
          %s554 = scalar_lea.vmem [#allocation16], %s553
          %s555 = smul.u32 2, %s39
          %s557 = ssub.s32 2048, 2048
          %558 = vsyncadd %s551, %s557
          %s559 = smul.addr %s555, 64
          %s560 = scalar_lea.hbm %s10, %s559
          %s561 = sshll.u32 %s554, 4
          %s562 = int_to_ptr.vmem [resolvable:$true] %s561
          %567 = dma.hbm_to_vmem [thread:$0]  %s560, 2048, %s562, %s551, 256, 128, 8
        $region72: #{tpu_custom_call.1} parent=59 // pred_fallthru
          _
        // Predicated region
        $region73: #{tpu_custom_call.1} parent=59 // pred_check
          %p568 = pneg %p296
        $region74: #{tpu_custom_call.1} parent=59 // pred_check_branch
          %570 = sbr.rel (%p568) target = $region76
        $region75: #{tpu_custom_call.1} parent=59 // pred_region
          %s571 = sand.u32 %s30, 1
          %s572 = scalar_lea.sflag [#allocation8], %s571
          %s573 = sand.u32 %s286, 1
          %s574 = smul.addr %s573, 128
          %s575 = scalar_lea.vmem [#allocation17], %s574
          %s576 = smul.u32 32, %s39
          %s578 = ssub.s32 2048, 2048
          %579 = vsyncadd %s572, %s578
          %s580 = smul.addr %s576, 64
          %s581 = scalar_lea.hbm %s11, %s580
          %s582 = sshll.u32 %s575, 4
          %s583 = int_to_ptr.vmem [resolvable:$true] %s582
          %588 = dma.hbm_to_vmem [thread:$0]  %s581, 2048, %s583, %s572, 64, 64, 4
        $region76: #{tpu_custom_call.1} parent=59 // pred_fallthru
          _
      $region60: #{tpu_custom_call.1} parent=5 // pred_fallthru
        _
      %p589 = scmp.le.s32.totalorder 1, %s30
      %p590 = scmp.lt.s32.totalorder %s30, 9
      %p591 = pnand %p589, %p590
      %p592 = pneg %p591
      // Predicated region
      $region77: #{tpu_custom_call.1} parent=5 // pred_check
        _
      $region78: #{tpu_custom_call.1} parent=5 // pred_check_branch
        %594 = sbr.rel (%p591) target = $region80
      $region79: #{tpu_custom_call.1} parent=5 // pred_region
        %s595 = ssub.s32 %s30, 1
        %s596 = sand.u32 %s35, 1
        %s597 = scalar_lea.sflag [#allocation8], %s596
        %s598 = sand.u32 %s64, 1
        %s599 = smul.addr %s598, 8
        %s600 = scalar_lea.vmem [#allocation7], %s599
        // Predicated region
        $region81: #{tpu_custom_call.1} parent=79 // pred_check
          %p601 = pneg %p77
        $region82: #{tpu_custom_call.1} parent=79 // pred_check_branch
          %603 = sbr.rel (%p601) target = $region84
        $region83: #{tpu_custom_call.1} parent=79 // pred_region
          %604 = dma.done %s597, 128
        $region84: #{tpu_custom_call.1} parent=79 // pred_fallthru
          _
        // Predicated region
        $region85: #{tpu_custom_call.1} parent=79 // pred_check
          %p605 = pneg %p182
        $region86: #{tpu_custom_call.1} parent=79 // pred_check_branch
          %607 = sbr.rel (%p605) target = $region88
        $region87: #{tpu_custom_call.1} parent=79 // pred_region
          %608 = dma.done [#allocation11], 2048
        $region88: #{tpu_custom_call.1} parent=79 // pred_fallthru
          _
        // Predicated region
        $region89: #{tpu_custom_call.1} parent=79 // pred_check
          %p609 = pneg %p203
        $region90: #{tpu_custom_call.1} parent=79 // pred_check_branch
          %611 = sbr.rel (%p609) target = $region92
        $region91: #{tpu_custom_call.1} parent=79 // pred_region
          %612 = dma.done [#allocation11], 2048
        $region92: #{tpu_custom_call.1} parent=79 // pred_fallthru
          _
        // Predicated region
        $region93: #{tpu_custom_call.1} parent=79 // pred_check
          %p613 = pneg %p224
        $region94: #{tpu_custom_call.1} parent=79 // pred_check_branch
          %615 = sbr.rel (%p613) target = $region96
        $region95: #{tpu_custom_call.1} parent=79 // pred_region
          %616 = dma.done [#allocation14], 2048
        $region96: #{tpu_custom_call.1} parent=79 // pred_fallthru
          _
        %s617 = sand.u32 %s35, 1
        %s618 = scalar_lea.sflag [#allocation8], %s617
        %s619 = sand.u32 %s237, 1
        %s620 = smul.addr %s619, 128
        %s621 = scalar_lea.vmem [#allocation15], %s620
        // Predicated region
        $region97: #{tpu_custom_call.1} parent=79 // pred_check
          %p622 = pneg %p250
        $region98: #{tpu_custom_call.1} parent=79 // pred_check_branch
          %624 = sbr.rel (%p622) target = $region100
        $region99: #{tpu_custom_call.1} parent=79 // pred_region
          %625 = dma.done %s618, 2048
        $region100: #{tpu_custom_call.1} parent=79 // pred_fallthru
          _
        %s626 = sand.u32 %s35, 1
        %s627 = scalar_lea.sflag [#allocation8], %s626
        %s628 = sand.u32 %s263, 1
        %s629 = smul.addr %s628, 128
        %s630 = scalar_lea.vmem [#allocation16], %s629
        // Predicated region
        $region101: #{tpu_custom_call.1} parent=79 // pred_check
          %p631 = pneg %p276
        $region102: #{tpu_custom_call.1} parent=79 // pred_check_branch
          %633 = sbr.rel (%p631) target = $region104
        $region103: #{tpu_custom_call.1} parent=79 // pred_region
          %634 = dma.done %s627, 2048
        $region104: #{tpu_custom_call.1} parent=79 // pred_fallthru
          _
        %s635 = sand.u32 %s35, 1
        %s636 = scalar_lea.sflag [#allocation8], %s635
        %s637 = sand.u32 %s289, 1
        %s638 = smul.addr %s637, 128
        %s639 = scalar_lea.vmem [#allocation17], %s638
        // Predicated region
        $region105: #{tpu_custom_call.1} parent=79 // pred_check
          %p640 = pneg %p302
        $region106: #{tpu_custom_call.1} parent=79 // pred_check_branch
          %642 = sbr.rel (%p640) target = $region108
        $region107: #{tpu_custom_call.1} parent=79 // pred_region
          %643 = dma.done %s636, 2048
        $region108: #{tpu_custom_call.1} parent=79 // pred_fallthru
          _
        // Predicated region
        $region109: #{tpu_custom_call.1} parent=79 // pred_check
          %p644 = pneg %p365
        $region110: #{tpu_custom_call.1} parent=79 // pred_check_branch
          %646 = sbr.rel (%p644) target = $region112
        $region111: #{tpu_custom_call.1} parent=79 // pred_region
          %647 = dma.done [#allocation11], 1024
        $region112: #{tpu_custom_call.1} parent=79 // pred_fallthru
          _
        %s648 = sand.u32 %s35, 1
        %s649 = scalar_lea.sflag [#allocation8], %s648
        %s650 = sand.u32 %s64, 1
        %s651 = smul.addr %s650, 8
        %s652 = scalar_lea.vmem [#allocation7], %s651
        %p653 = pneg %p77
        %p654 = pneg %p74
        %p655 = pneg %p98
        %p656 = pneg %p95
        %p657 = pneg %p119
        %p658 = pneg %p116
        %p659 = pneg %p140
        %p660 = pneg %p137
        %p661 = pneg %p161
        %p662 = pneg %p158
        %p663 = pneg %p182
        %p664 = pneg %p179
        %p665 = pneg %p203
        %p666 = pneg %p200
        %p667 = pneg %p224
        %p668 = pneg %p221
        %s669 = sand.u32 %s35, 1
        %s670 = scalar_lea.sflag [#allocation8], %s669
        %s671 = sand.u32 %s237, 1
        %s672 = smul.addr %s671, 128
        %s673 = scalar_lea.vmem [#allocation15], %s672
        %p674 = pneg %p250
        %p675 = pneg %p247
        %s676 = sand.u32 %s35, 1
        %s677 = scalar_lea.sflag [#allocation8], %s676
        %s678 = sand.u32 %s263, 1
        %s679 = smul.addr %s678, 128
        %s680 = scalar_lea.vmem [#allocation16], %s679
        %p681 = pneg %p276
        %p682 = pneg %p273
        %s683 = sand.u32 %s35, 1
        %s684 = scalar_lea.sflag [#allocation8], %s683
        %s685 = sand.u32 %s289, 1
        %s686 = smul.addr %s685, 128
        %s687 = scalar_lea.vmem [#allocation17], %s686
        %p688 = pneg %p302
        %p689 = pneg %p299
        %p690 = pneg %p323
        %p691 = pneg %p320
        %p692 = pneg %p344
        %p693 = pneg %p341
        %p694 = pneg %p365
        %p695 = pneg %p362
        %p696 = pneg %p386
        %p697 = pneg %p383
        %p698 = pneg %p414
        %p699 = pneg %p411
        %s700 = sand.u32 %s401, 1
        %s701 = scalar_lea.sflag [#allocation9], %s700
        %s702 = sand.u32 %s401, 1
        %s703 = smul.addr %s702, 8
        %s704 = scalar_lea.vmem [#allocation19], %s703
        %s705 = smul.u32 2, %s42
        %s706 = smul.u32 2, %s42
        %s707 = smul.u32 32, %s42
        %p709 = scmp.eq.s32.totalorder %s41, 0
        %p710 = scmp.eq.s32.totalorder %s42, 0
        %p711 = pnand %p709, %p710
        %p712 = pneg %p711
        // Predicated region
        $region113: #{tpu_custom_call.1} parent=79 // pred_check
          _
        $region114: #{tpu_custom_call.1} parent=79 // pred_check_branch
          %714 = sbr.rel (%p711) target = $region116
        $region115: #{tpu_custom_call.1} parent=79 // pred_region
          %s715 = smul.u32 %s40, 16
          %s716 = smul.addr %s715, 16
          %s717 = scalar_lea.hbm %s1, %s716
          // Predicated region
          $region117: #{tpu_custom_call.1} parent=115 // pred_check
            _
          $region118: #{tpu_custom_call.1} parent=115 // pred_check_branch
            %719 = sbr.rel target = $region120
          $region119: #{tpu_custom_call.1} parent=115 // pred_region
            %720 = sst [smem:[#allocation22]] [#allocation21]
            %721 = sst [smem:[#allocation23]] [#allocation20]
          $region120: #{tpu_custom_call.1} parent=115 // pred_fallthru
            _
          %723 = shalt.err (0)
          %s725 = sshll.u32 [#allocation2], 4
          %s726 = int_to_ptr.vmem [resolvable:$true] %s725
          %728 = dma.hbm_to_vmem [thread:$0]  %s717, 256, %s726, [#allocation6]
          %s729 = smul.u32 16, 1
          %s730 = sshll.u32 %s729, 4
          %731 = dma.done [#allocation6], %s730
          %v732 = vld [vmem:[#allocation2] sm:$0xff]
          %v733 = vld [vmem:[#allocation2 + $0x8] sm:$0xff]
          %v734 = vld [vmem:[%s4] sm:$0x1]
          %v735 = vld [vmem:[%s5] sm:$0x1]
          %736 = vadd.xlane.f32.xlu0 %v732
          %v737 = vpop.xlane.xlu0 %736
          %738 = vadd.xlane.f32.xlu0 %v733
          %v739 = vpop.xlane.xlu0 %738
          %v740 = vrcp.pop 128.0
          %v741 = vmul.f32 %v737, %v740
          %v742 = vmul.f32 %v739, %v740
          %v743 = vsub.f32 %v732, %v741
          %v744 = vsub.f32 %v733, %v742
          %v745 = vmul.f32 %v743, %v743
          %v746 = vmul.f32 %v744, %v744
          %747 = vadd.xlane.f32.xlu0 %v745
          %v748 = vpop.xlane.xlu0 %747
          %749 = vadd.xlane.f32.xlu0 %v746
          %v750 = vpop.xlane.xlu0 %749
          %v751 = vmul.f32 %v748, %v740
          %v752 = vmul.f32 %v750, %v740
          %v753 = vadd.f32 %v751, 1e-05
          %v754 = vadd.f32 %v752, 1e-05
          %v755 = vrsqrt.pop %v753
          %v756 = vrsqrt.pop %v754
          %v757 = vmul.f32 %v743, %v755
          %v758 = vmul.f32 %v744, %v756
          %v760 = vlaneseq
          %v761 = vshrl.u32 %v760, 7
          %v762 = vsub.s32 0, %v761
          %v763 = vrot.slane %v734, %v762
          %v765 = vmul.f32 %v757, %v763
          %v766 = vmul.f32 %v758, %v763
          %v768 = vlaneseq
          %v769 = vshrl.u32 %v768, 7
          %v770 = vsub.s32 0, %v769
          %v771 = vrot.slane %v735, %v770
          %v773 = vadd.f32 %v765, %v771
          %v774 = vadd.f32 %v766, %v771
          %v775 = vpack.c.bf16 %v774, %v773
          %v776 = vld [vmem:[#allocation12] sm:$0xff]
          %v777 = vld [vmem:[#allocation12 + $0x8] sm:$0xff]
          %v778 = vld [vmem:[#allocation12 + $0x10] sm:$0xff]
          %v779 = vld [vmem:[#allocation12 + $0x18] sm:$0xff]
          %v780 = vld [vmem:[#allocation12 + $0x20] sm:$0xff]
          %v781 = vld [vmem:[#allocation12 + $0x28] sm:$0xff]
          %v782 = vld [vmem:[#allocation12 + $0x30] sm:$0xff]
          %v783 = vld [vmem:[#allocation12 + $0x38] sm:$0xff]
          %v784 = vld [vmem:[#allocation12 + $0x40] sm:$0xff]
          %v785 = vld [vmem:[#allocation12 + $0x48] sm:$0xff]
          %v786 = vld [vmem:[#allocation12 + $0x50] sm:$0xff]
          %v787 = vld [vmem:[#allocation12 + $0x58] sm:$0xff]
          %v788 = vld [vmem:[#allocation12 + $0x60] sm:$0xff]
          %v789 = vld [vmem:[#allocation12 + $0x68] sm:$0xff]
          %v790 = vld [vmem:[#allocation12 + $0x70] sm:$0xff]
          %v791 = vld [vmem:[#allocation12 + $0x78] sm:$0xff]
          %v808 = vunpack.c.l.b16 %v776
          %v809 = vunpack.c.h.b16 %v776
          %v810 = vunpack.c.l.b16 %v777
          %v811 = vunpack.c.h.b16 %v777
          %v812 = vunpack.c.l.b16 %v778
          %v813 = vunpack.c.h.b16 %v778
          %v814 = vunpack.c.l.b16 %v779
          %v815 = vunpack.c.h.b16 %v779
          %v816 = vunpack.c.l.b16 %v780
          %v817 = vunpack.c.h.b16 %v780
          %v818 = vunpack.c.l.b16 %v781
          %v819 = vunpack.c.h.b16 %v781
          %v820 = vunpack.c.l.b16 %v782
          %v821 = vunpack.c.h.b16 %v782
          %v822 = vunpack.c.l.b16 %v783
          %v823 = vunpack.c.h.b16 %v783
          %v824 = vunpack.c.l.b16 %v784
          %v825 = vunpack.c.h.b16 %v784
          %v826 = vunpack.c.l.b16 %v785
          %v827 = vunpack.c.h.b16 %v785
          %v828 = vunpack.c.l.b16 %v786
          %v829 = vunpack.c.h.b16 %v786
          %v830 = vunpack.c.l.b16 %v787
          %v831 = vunpack.c.h.b16 %v787
          %v832 = vunpack.c.l.b16 %v788
          %v833 = vunpack.c.h.b16 %v788
          %v834 = vunpack.c.l.b16 %v789
          %v835 = vunpack.c.h.b16 %v789
          %v836 = vunpack.c.l.b16 %v790
          %v837 = vunpack.c.h.b16 %v790
          %v838 = vunpack.c.l.b16 %v791
          %v839 = vunpack.c.h.b16 %v791
          %v840 = vpack.c.b16 %v810, %v808
          %v841 = vpack.c.b16 %v811, %v809
          %v842 = vpack.c.b16 %v814, %v812
          %v843 = vpack.c.b16 %v815, %v813
          %v844 = vpack.c.b16 %v818, %v816
          %v845 = vpack.c.b16 %v819, %v817
          %v846 = vpack.c.b16 %v822, %v820
          %v847 = vpack.c.b16 %v823, %v821
          %v848 = vpack.c.b16 %v826, %v824
          %v849 = vpack.c.b16 %v827, %v825
          %v850 = vpack.c.b16 %v830, %v828
          %v851 = vpack.c.b16 %v831, %v829
          %v852 = vpack.c.b16 %v834, %v832
          %v853 = vpack.c.b16 %v835, %v833
          %v854 = vpack.c.b16 %v838, %v836
          %v855 = vpack.c.b16 %v839, %v837
          %872 = vmatprep.subr.bf16.mxu0 %v841
          %873 = vmatpush1.bf16.msra.mxu0 %v840
          %874 = vmatprep.subr.bf16.mxu0 %v843
          %875 = vmatpush1.bf16.msra.mxu0 %v842
          %876 = vmatprep.subr.bf16.mxu0 %v845
          %877 = vmatpush1.bf16.msra.mxu0 %v844
          %878 = vmatprep.subr.bf16.mxu0 %v847
          %879 = vmatpush1.bf16.msra.mxu0 %v846
          %880 = vmatprep.subr.bf16.mxu0 %v849
          %881 = vmatpush1.bf16.msra.mxu0 %v848
          %882 = vmatprep.subr.bf16.mxu0 %v851
          %883 = vmatpush1.bf16.msra.mxu0 %v850
          %884 = vmatprep.subr.bf16.mxu0 %v853
          %885 = vmatpush1.bf16.msra.mxu0 %v852
          %886 = vmatprep.subr.bf16.mxu0 %v855
          %887 = vmatpush1.bf16.msra.mxu0 %v854
          %888 = vmatprep.subr.bf16.mxu0 0
          %889 = vmatpush1.bf16.msra.mxu0 0
          %890 = vmatprep.subr.bf16.mxu0 0
          %891 = vmatpush1.bf16.msra.mxu0 0
          %892 = vmatprep.subr.bf16.mxu0 0
          %893 = vmatpush1.bf16.msra.mxu0 0
          %894 = vmatprep.subr.bf16.mxu0 0
          %895 = vmatpush1.bf16.msra.mxu0 0
          %896 = vmatprep.subr.bf16.mxu0 0
          %897 = vmatpush1.bf16.msra.mxu0 0
          %898 = vmatprep.subr.bf16.mxu0 0
          %899 = vmatpush1.bf16.msra.mxu0 0
          %900 = vmatprep.subr.bf16.mxu0 0
          %901 = vmatpush1.bf16.msra.mxu0 0
          %902 = vmatprep.subr.bf16.mxu0 0
          %903 = vmatpush1.bf16.msra.mxu0 0
          %904 = vmatprep.mubr.bf16.mxu0 0
          %905 = vmatmul.mubr.bf16.gmra.mrb[0].mxu0 %v775
          %v906 = vpop.f32.mrb[0].mxu0
          %v907 = vadd.f32 0.0, %v906
          %v908 = vpop.f32.mrb[0].mxu0
          %v909 = vadd.f32 0.0, %v908
          %v910 = vpop.f32.mrb[0].mxu0
          %v911 = vadd.f32 0.0, %v910
          %v912 = vpop.f32.mrb[0].mxu0
          %v913 = vadd.f32 0.0, %v912
          %914 = vdwg.mxu0
          %v915 = vpack.c.bf16 %v911, %v907
          %v916 = vpack.c.bf16 %v913, %v909
          %917 = vst [vmem:[#allocation3] sm:$0xff] %v915
          %918 = vst [vmem:[#allocation3 + $0x8] sm:$0xff] %v916
        $region116: #{tpu_custom_call.1} parent=79 // pred_fallthru
          _
        // Predicated region
        $region121: #{tpu_custom_call.1} parent=79 // pred_check
          %p919 = pneg %p710
        $region122: #{tpu_custom_call.1} parent=79 // pred_check_branch
          %921 = sbr.rel (%p919) target = $region124
        $region123: #{tpu_custom_call.1} parent=79 // pred_region
          %v922 = vld [vmem:[%s600] sm:$0xff]
          %v923 = vld [vmem:[%s2] sm:$0x1]
          %v924 = vld [vmem:[%s3] sm:$0x1]
          %925 = vadd.xlane.f32.xlu0 %v922
          %v926 = vpop.xlane.xlu0 %925
          %v927 = vrcp.pop 128.0
          %v928 = vmul.f32 %v926, %v927
          %v929 = vsub.f32 %v922, %v928
          %v930 = vmul.f32 %v929, %v929
          %931 = vadd.xlane.f32.xlu0 %v930
          %v932 = vpop.xlane.xlu0 %931
          %v933 = vmul.f32 %v932, %v927
          %v934 = vadd.f32 %v933, 1e-05
          %v935 = vrsqrt.pop %v934
          %v936 = vmul.f32 %v929, %v935
          %v938 = vlaneseq
          %v939 = vshrl.u32 %v938, 7
          %v940 = vsub.s32 0, %v939
          %v941 = vrot.slane %v923, %v940
          %v943 = vmul.f32 %v936, %v941
          %v945 = vlaneseq
          %v946 = vshrl.u32 %v945, 7
          %v947 = vsub.s32 0, %v946
          %v948 = vrot.slane %v924, %v947
          %v950 = vadd.f32 %v943, %v948
          %v951 = vpack.c.bf16 %v950, %v950
          %952 = vst [vmem:[#allocation4] sm:$0xf] %v951
          %v953 = vld [vmem:[#allocation10] sm:$0xff]
          %v954 = vld [vmem:[#allocation10 + $0x8] sm:$0xff]
          %v955 = vld [vmem:[#allocation10 + $0x10] sm:$0xff]
          %v956 = vld [vmem:[#allocation10 + $0x18] sm:$0xff]
          %v957 = vld [vmem:[#allocation10 + $0x20] sm:$0xff]
          %v958 = vld [vmem:[#allocation10 + $0x28] sm:$0xff]
          %v959 = vld [vmem:[#allocation10 + $0x30] sm:$0xff]
          %v960 = vld [vmem:[#allocation10 + $0x38] sm:$0xff]
          %v961 = vld [vmem:[#allocation10 + $0x40] sm:$0xff]
          %v962 = vld [vmem:[#allocation10 + $0x48] sm:$0xff]
          %v963 = vld [vmem:[#allocation10 + $0x50] sm:$0xff]
          %v964 = vld [vmem:[#allocation10 + $0x58] sm:$0xff]
          %v965 = vld [vmem:[#allocation10 + $0x60] sm:$0xff]
          %v966 = vld [vmem:[#allocation10 + $0x68] sm:$0xff]
          %v967 = vld [vmem:[#allocation10 + $0x70] sm:$0xff]
          %v968 = vld [vmem:[#allocation10 + $0x78] sm:$0xff]
          %v985 = vunpack.c.l.b16 %v953
          %v986 = vunpack.c.h.b16 %v953
          %v987 = vunpack.c.l.b16 %v954
          %v988 = vunpack.c.h.b16 %v954
          %v989 = vunpack.c.l.b16 %v955
          %v990 = vunpack.c.h.b16 %v955
          %v991 = vunpack.c.l.b16 %v956
          %v992 = vunpack.c.h.b16 %v956
          %v993 = vunpack.c.l.b16 %v957
          %v994 = vunpack.c.h.b16 %v957
          %v995 = vunpack.c.l.b16 %v958
          %v996 = vunpack.c.h.b16 %v958
          %v997 = vunpack.c.l.b16 %v959
          %v998 = vunpack.c.h.b16 %v959
          %v999 = vunpack.c.l.b16 %v960
          %v1000 = vunpack.c.h.b16 %v960
          %v1001 = vunpack.c.l.b16 %v961
          %v1002 = vunpack.c.h.b16 %v961
          %v1003 = vunpack.c.l.b16 %v962
          %v1004 = vunpack.c.h.b16 %v962
          %v1005 = vunpack.c.l.b16 %v963
          %v1006 = vunpack.c.h.b16 %v963
          %v1007 = vunpack.c.l.b16 %v964
          %v1008 = vunpack.c.h.b16 %v964
          %v1009 = vunpack.c.l.b16 %v965
          %v1010 = vunpack.c.h.b16 %v965
          %v1011 = vunpack.c.l.b16 %v966
          %v1012 = vunpack.c.h.b16 %v966
          %v1013 = vunpack.c.l.b16 %v967
          %v1014 = vunpack.c.h.b16 %v967
          %v1015 = vunpack.c.l.b16 %v968
          %v1016 = vunpack.c.h.b16 %v968
          %v1017 = vpack.c.b16 %v987, %v985
          %v1018 = vpack.c.b16 %v988, %v986
          %v1019 = vpack.c.b16 %v991, %v989
          %v1020 = vpack.c.b16 %v992, %v990
          %v1021 = vpack.c.b16 %v995, %v993
          %v1022 = vpack.c.b16 %v996, %v994
          %v1023 = vpack.c.b16 %v999, %v997
          %v1024 = vpack.c.b16 %v1000, %v998
          %v1025 = vpack.c.b16 %v1003, %v1001
          %v1026 = vpack.c.b16 %v1004, %v1002
          %v1027 = vpack.c.b16 %v1007, %v1005
          %v1028 = vpack.c.b16 %v1008, %v1006
          %v1029 = vpack.c.b16 %v1011, %v1009
          %v1030 = vpack.c.b16 %v1012, %v1010
          %v1031 = vpack.c.b16 %v1015, %v1013
          %v1032 = vpack.c.b16 %v1016, %v1014
          %1049 = vmatprep.subr.bf16.mxu0 %v1018
          %1050 = vmatpush1.bf16.msra.mxu0 %v1017
          %1051 = vmatprep.subr.bf16.mxu0 %v1020
          %1052 = vmatpush1.bf16.msra.mxu0 %v1019
          %1053 = vmatprep.subr.bf16.mxu0 %v1022
          %1054 = vmatpush1.bf16.msra.mxu0 %v1021
          %1055 = vmatprep.subr.bf16.mxu0 %v1024
          %1056 = vmatpush1.bf16.msra.mxu0 %v1023
          %1057 = vmatprep.subr.bf16.mxu0 %v1026
          %1058 = vmatpush1.bf16.msra.mxu0 %v1025
          %1059 = vmatprep.subr.bf16.mxu0 %v1028
          %1060 = vmatpush1.bf16.msra.mxu0 %v1027
          %1061 = vmatprep.subr.bf16.mxu0 %v1030
          %1062 = vmatpush1.bf16.msra.mxu0 %v1029
          %1063 = vmatprep.subr.bf16.mxu0 %v1032
          %1064 = vmatpush1.bf16.msra.mxu0 %v1031
          %1065 = vmatprep.subr.bf16.mxu0 0
          %1066 = vmatpush1.bf16.msra.mxu0 0
          %1067 = vmatprep.subr.bf16.mxu0 0
          %1068 = vmatpush1.bf16.msra.mxu0 0
          %1069 = vmatprep.subr.bf16.mxu0 0
          %1070 = vmatpush1.bf16.msra.mxu0 0
          %1071 = vmatprep.subr.bf16.mxu0 0
          %1072 = vmatpush1.bf16.msra.mxu0 0
          %1073 = vmatprep.subr.bf16.mxu0 0
          %1074 = vmatpush1.bf16.msra.mxu0 0
          %1075 = vmatprep.subr.bf16.mxu0 0
          %1076 = vmatpush1.bf16.msra.mxu0 0
          %1077 = vmatprep.subr.bf16.mxu0 0
          %1078 = vmatpush1.bf16.msra.mxu0 0
          %1079 = vmatprep.subr.bf16.mxu0 0
          %1080 = vmatpush1.bf16.msra.mxu0 0
          %1081 = vmatprep.mubr.bf16.mxu0 0
          %1082 = vmatmul.mubr.bf16.gmra.mrb[0].mxu0 %v951
          %v1083 = vpop.f32.mrb[0].mxu0
          %v1084 = vadd.f32 0.0, %v1083
          %v1085 = vpop.f32.mrb[0].mxu0
          %v1086 = vadd.f32 0.0, %v1085
          %v1087 = vpop.f32.mrb[0].mxu0
          %v1088 = vpop.f32.mrb[0].mxu0
          %1089 = vdwg.mxu0
          %v1092 = vcombine.low %v1084, %v1086
          %v1093 = vcombine.high %v1084, %v1086
          %v1097 = vunpack.c.l.s4 1935823168
          %v1098 = vunpack.c.0.s8 %v1097
          %v1099 = vlaneseq
          %v1100 = vshrl.u32 %v1099, 7
          %v1101 = vsub.s32 %v1098, %v1100
          %v1102 = vrot.slane %v1092, %v1101
          %v1104 = vunpack.c.l.s4 1935823168
          %v1105 = vunpack.c.0.s8 %v1104
          %v1106 = vlaneseq
          %v1107 = vshrl.u32 %v1106, 7
          %v1108 = vsub.s32 %v1105, %v1107
          %v1109 = vrot.slane %v1093, %v1108
          %v1110 = vpack.c.bf16 %v1109, %v1102
          %v1111 = vld [vmem:[#allocation3] sm:$0xff]
          %v1112 = vld [vmem:[#allocation3 + $0x8] sm:$0xff]
          %1113 = vmatprep.subr.bf16.mxu0 0
          %1114 = vmatpush1.bf16.xpose.msra.mxu0 %v1111
          %1115 = vmatprep.subr.bf16.mxu0 0
          %1116 = vmatpush1.bf16.xpose.msra.mxu0 0
          %1117 = vmatprep.subr.bf16.mxu0 0
          %1118 = vmatpush1.bf16.xpose.msra.mxu0 0
          %1119 = vmatprep.subr.bf16.mxu0 0
          %1120 = vmatpush1.bf16.xpose.msra.mxu0 0
          %1121 = vmatprep.subr.bf16.mxu0 0
          %1122 = vmatpush1.bf16.xpose.msra.mxu0 0
          %1123 = vmatprep.subr.bf16.mxu0 0
          %1124 = vmatpush1.bf16.xpose.msra.mxu0 0
          %1125 = vmatprep.subr.bf16.mxu0 0
          %1126 = vmatpush1.bf16.xpose.msra.mxu0 0
          %1127 = vmatprep.subr.bf16.mxu0 0
          %1128 = vmatpush1.bf16.xpose.msra.mxu0 0
          %1129 = vmatprep.subr.bf16.mxu0 0
          %1130 = vmatpush1.bf16.xpose.msra.mxu0 0
          %1131 = vmatprep.subr.bf16.mxu0 0
          %1132 = vmatpush1.bf16.xpose.msra.mxu0 0
          %1133 = vmatprep.subr.bf16.mxu0 0
          %1134 = vmatpush1.bf16.xpose.msra.mxu0 0
          %1135 = vmatprep.subr.bf16.mxu0 0
          %1136 = vmatpush1.bf16.xpose.msra.mxu0 0
          %1137 = vmatprep.subr.bf16.mxu0 0
          %1138 = vmatpush1.bf16.xpose.msra.mxu0 0
          %1139 = vmatprep.subr.bf16.mxu0 0
          %1140 = vmatpush1.bf16.xpose.msra.mxu0 0
          %1141 = vmatprep.subr.bf16.mxu0 0
          %1142 = vmatpush1.bf16.xpose.msra.mxu0 0
          %1143 = vmatprep.subr.bf16.mxu0 0
          %1144 = vmatpush1.bf16.xpose.msra.mxu0 0
          %1145 = vmatprep.mubr.bf16.mxu0 0
          %1146 = vmatmul.mubr.bf16.gmra.mrb[0].mxu0 %v1110
          %v1147 = vpop.f32.mrb[0].mxu0
          %v1148 = vadd.f32 0.0, %v1147
          %v1149 = vpop.f32.mrb[0].mxu0
          %v1150 = vpop.f32.mrb[0].mxu0
          %v1151 = vadd.f32 0.0, %v1150
          %v1152 = vpop.f32.mrb[0].mxu0
          %1153 = vdwg.mxu0
          %vm1154 = vcmask 130048
          %v1155 = vsel %vm1154, %v1148, -inf
          %1156 = vmax.xlane.f32.xlu0 %v1155
          %v1157 = vpop.xlane.xlu0 %1156
          %v1158 = vsel %vm1154, %v1151, -inf
          %1159 = vmax.xlane.f32.xlu0 %v1158
          %v1160 = vpop.xlane.xlu0 %1159
          %v1161 = vsub.f32 %v1148, %v1157
          %v1162 = vsub.f32 %v1151, %v1160
          %v1163 = vmul.f32 %v1161, 1.442695
          %v1164 = vpow.pop %v1163
          %v1165 = vmul.f32 %v1162, 1.442695
          %v1166 = vpow.pop %v1165
          %v1167 = vsel %vm1154, %v1164, 0.0
          %1168 = vadd.xlane.f32.xlu0 %v1167
          %v1169 = vpop.xlane.xlu0 %1168
          %v1170 = vsel %vm1154, %v1166, 0.0
          %1171 = vadd.xlane.f32.xlu0 %v1170
          %v1172 = vpop.xlane.xlu0 %1171
          %v1173 = vrcp.pop %v1169
          %v1174 = vrcp.pop %v1172
          %v1175 = vmul.f32 %v1164, %v1173
          %v1176 = vmul.f32 %v1166, %v1174
          %v1177 = vpack.c.bf16 %v1176, %v1175
          %v1179 = vsel %vm1154, %v1177, 0
          %1181 = vmatprep.subr.bf16.mxu0 0
          %1182 = vmatpush1.bf16.msra.mxu0 %v1112
          %1183 = vmatprep.subr.bf16.mxu0 0
          %1184 = vmatpush1.bf16.msra.mxu0 0
          %1185 = vmatprep.subr.bf16.mxu0 0
          %1186 = vmatpush1.bf16.msra.mxu0 0
          %1187 = vmatprep.subr.bf16.mxu0 0
          %1188 = vmatpush1.bf16.msra.mxu0 0
          %1189 = vmatprep.subr.bf16.mxu0 0
          %1190 = vmatpush1.bf16.msra.mxu0 0
          %1191 = vmatprep.subr.bf16.mxu0 0
          %1192 = vmatpush1.bf16.msra.mxu0 0
          %1193 = vmatprep.subr.bf16.mxu0 0
          %1194 = vmatpush1.bf16.msra.mxu0 0
          %1195 = vmatprep.subr.bf16.mxu0 0
          %1196 = vmatpush1.bf16.msra.mxu0 0
          %1197 = vmatprep.subr.bf16.mxu0 0
          %1198 = vmatpush1.bf16.msra.mxu0 0
          %1199 = vmatprep.subr.bf16.mxu0 0
          %1200 = vmatpush1.bf16.msra.mxu0 0
          %1201 = vmatprep.subr.bf16.mxu0 0
          %1202 = vmatpush1.bf16.msra.mxu0 0
          %1203 = vmatprep.subr.bf16.mxu0 0
          %1204 = vmatpush1.bf16.msra.mxu0 0
          %1205 = vmatprep.subr.bf16.mxu0 0
          %1206 = vmatpush1.bf16.msra.mxu0 0
          %1207 = vmatprep.subr.bf16.mxu0 0
          %1208 = vmatpush1.bf16.msra.mxu0 0
          %1209 = vmatprep.subr.bf16.mxu0 0
          %1210 = vmatpush1.bf16.msra.mxu0 0
          %1211 = vmatprep.subr.bf16.mxu0 0
          %1212 = vmatpush1.bf16.msra.mxu0 0
          %1213 = vmatprep.mubr.bf16.mxu0 0
          %1214 = vmatmul.mubr.bf16.gmra.mrb[0].mxu0 %v1179
          %v1215 = vpop.f32.mrb[0].mxu0
          %v1216 = vadd.f32 0.0, %v1215
          %v1217 = vpop.f32.mrb[0].mxu0
          %v1218 = vpop.f32.mrb[0].mxu0
          %v1219 = vadd.f32 0.0, %v1218
          %v1220 = vpop.f32.mrb[0].mxu0
          %1221 = vdwg.mxu0
          %v1223 = vunpack.c.l.s4 1966171168
          %v1224 = vunpack.c.0.s8 %v1223
          %v1225 = vlaneseq
          %v1226 = vshrl.u32 %v1225, 7
          %v1227 = vsub.s32 %v1224, %v1226
          %v1228 = vrot.slane %v1216, %v1227
          %v1230 = vunpack.c.l.s4 1966171168
          %v1231 = vunpack.c.0.s8 %v1230
          %v1232 = vlaneseq
          %v1233 = vshrl.u32 %v1232, 7
          %v1234 = vsub.s32 %v1231, %v1233
          %v1235 = vrot.slane %v1219, %v1234
          %v1238 = vcombine.low %v1228, %v1235
          %v1239 = vcombine.high %v1228, %v1235
          %v1242 = vpack.c.bf16 %v1238, %v1238
          %v1243 = vpack.c.bf16 %v1239, %v1239
          %v1244 = vld [vmem:[#allocation13] sm:$0xf]
          %v1245 = vld [vmem:[#allocation13 + $0x4] sm:$0xf]
          %v1246 = vld [vmem:[#allocation13 + $0x8] sm:$0xf]
          %v1247 = vld [vmem:[#allocation13 + $0xc] sm:$0xf]
          %v1248 = vld [vmem:[#allocation13 + $0x10] sm:$0xf]
          %v1249 = vld [vmem:[#allocation13 + $0x14] sm:$0xf]
          %v1250 = vld [vmem:[#allocation13 + $0x18] sm:$0xf]
          %v1251 = vld [vmem:[#allocation13 + $0x1c] sm:$0xf]
          %v1252 = vld [vmem:[#allocation13 + $0x20] sm:$0xf]
          %v1253 = vld [vmem:[#allocation13 + $0x24] sm:$0xf]
          %v1254 = vld [vmem:[#allocation13 + $0x28] sm:$0xf]
          %v1255 = vld [vmem:[#allocation13 + $0x2c] sm:$0xf]
          %v1256 = vld [vmem:[#allocation13 + $0x30] sm:$0xf]
          %v1257 = vld [vmem:[#allocation13 + $0x34] sm:$0xf]
          %v1258 = vld [vmem:[#allocation13 + $0x38] sm:$0xf]
          %v1259 = vld [vmem:[#allocation13 + $0x3c] sm:$0xf]
          %v1260 = vld [vmem:[#allocation13 + $0x40] sm:$0xf]
          %v1261 = vld [vmem:[#allocation13 + $0x44] sm:$0xf]
          %v1262 = vld [vmem:[#allocation13 + $0x48] sm:$0xf]
          %v1263 = vld [vmem:[#allocation13 + $0x4c] sm:$0xf]
          %v1264 = vld [vmem:[#allocation13 + $0x50] sm:$0xf]
          %v1265 = vld [vmem:[#allocation13 + $0x54] sm:$0xf]
          %v1266 = vld [vmem:[#allocation13 + $0x58] sm:$0xf]
          %v1267 = vld [vmem:[#allocation13 + $0x5c] sm:$0xf]
          %v1268 = vld [vmem:[#allocation13 + $0x60] sm:$0xf]
          %v1269 = vld [vmem:[#allocation13 + $0x64] sm:$0xf]
          %v1270 = vld [vmem:[#allocation13 + $0x68] sm:$0xf]
          %v1271 = vld [vmem:[#allocation13 + $0x6c] sm:$0xf]
          %v1272 = vld [vmem:[#allocation13 + $0x70] sm:$0xf]
          %v1273 = vld [vmem:[#allocation13 + $0x74] sm:$0xf]
          %v1274 = vld [vmem:[#allocation13 + $0x78] sm:$0xf]
          %v1275 = vld [vmem:[#allocation13 + $0x7c] sm:$0xf]
          %v1308 = vunpack.c.l.b16 %v1244
          %v1309 = vunpack.c.l.b16 %v1245
          %v1310 = vunpack.c.l.b16 %v1246
          %v1311 = vunpack.c.l.b16 %v1247
          %v1312 = vunpack.c.l.b16 %v1248
          %v1313 = vunpack.c.l.b16 %v1249
          %v1314 = vunpack.c.l.b16 %v1250
          %v1315 = vunpack.c.l.b16 %v1251
          %v1316 = vunpack.c.l.b16 %v1252
          %v1317 = vunpack.c.l.b16 %v1253
          %v1318 = vunpack.c.l.b16 %v1254
          %v1319 = vunpack.c.l.b16 %v1255
          %v1320 = vunpack.c.l.b16 %v1256
          %v1321 = vunpack.c.l.b16 %v1257
          %v1322 = vunpack.c.l.b16 %v1258
          %v1323 = vunpack.c.l.b16 %v1259
          %v1324 = vunpack.c.l.b16 %v1260
          %v1325 = vunpack.c.l.b16 %v1261
          %v1326 = vunpack.c.l.b16 %v1262
          %v1327 = vunpack.c.l.b16 %v1263
          %v1328 = vunpack.c.l.b16 %v1264
          %v1329 = vunpack.c.l.b16 %v1265
          %v1330 = vunpack.c.l.b16 %v1266
          %v1331 = vunpack.c.l.b16 %v1267
          %v1332 = vunpack.c.l.b16 %v1268
          %v1333 = vunpack.c.l.b16 %v1269
          %v1334 = vunpack.c.l.b16 %v1270
          %v1335 = vunpack.c.l.b16 %v1271
          %v1336 = vunpack.c.l.b16 %v1272
          %v1337 = vunpack.c.l.b16 %v1273
          %v1338 = vunpack.c.l.b16 %v1274
          %v1339 = vunpack.c.l.b16 %v1275
          %v1340 = vpack.c.b16 %v1309, %v1308
          %v1341 = vpack.c.b16 %v1311, %v1310
          %v1342 = vpack.c.b16 %v1313, %v1312
          %v1343 = vpack.c.b16 %v1315, %v1314
          %v1344 = vpack.c.b16 %v1317, %v1316
          %v1345 = vpack.c.b16 %v1319, %v1318
          %v1346 = vpack.c.b16 %v1321, %v1320
          %v1347 = vpack.c.b16 %v1323, %v1322
          %v1348 = vpack.c.b16 %v1325, %v1324
          %v1349 = vpack.c.b16 %v1327, %v1326
          %v1350 = vpack.c.b16 %v1329, %v1328
          %v1351 = vpack.c.b16 %v1331, %v1330
          %v1352 = vpack.c.b16 %v1333, %v1332
          %v1353 = vpack.c.b16 %v1335, %v1334
          %v1354 = vpack.c.b16 %v1337, %v1336
          %v1355 = vpack.c.b16 %v1339, %v1338
          %1372 = vmatprep.subr.bf16.mxu0 0
          %1373 = vmatpush1.bf16.msra.mxu0 %v1340
          %1374 = vmatprep.subr.bf16.mxu0 0
          %1375 = vmatpush1.bf16.msra.mxu0 %v1341
          %1376 = vmatprep.subr.bf16.mxu0 0
          %1377 = vmatpush1.bf16.msra.mxu0 %v1342
          %1378 = vmatprep.subr.bf16.mxu0 0
          %1379 = vmatpush1.bf16.msra.mxu0 %v1343
          %1380 = vmatprep.subr.bf16.mxu0 0
          %1381 = vmatpush1.bf16.msra.mxu0 %v1344
          %1382 = vmatprep.subr.bf16.mxu0 0
          %1383 = vmatpush1.bf16.msra.mxu0 %v1345
          %1384 = vmatprep.subr.bf16.mxu0 0
          %1385 = vmatpush1.bf16.msra.mxu0 %v1346
          %1386 = vmatprep.subr.bf16.mxu0 0
          %1387 = vmatpush1.bf16.msra.mxu0 %v1347
          %1388 = vmatprep.subr.bf16.mxu0 0
          %1389 = vmatpush1.bf16.msra.mxu0 %v1348
          %1390 = vmatprep.subr.bf16.mxu0 0
          %1391 = vmatpush1.bf16.msra.mxu0 %v1349
          %1392 = vmatprep.subr.bf16.mxu0 0
          %1393 = vmatpush1.bf16.msra.mxu0 %v1350
          %1394 = vmatprep.subr.bf16.mxu0 0
          %1395 = vmatpush1.bf16.msra.mxu0 %v1351
          %1396 = vmatprep.subr.bf16.mxu0 0
          %1397 = vmatpush1.bf16.msra.mxu0 %v1352
          %1398 = vmatprep.subr.bf16.mxu0 0
          %1399 = vmatpush1.bf16.msra.mxu0 %v1353
          %1400 = vmatprep.subr.bf16.mxu0 0
          %1401 = vmatpush1.bf16.msra.mxu0 %v1354
          %1402 = vmatprep.subr.bf16.mxu0 0
          %1403 = vmatpush1.bf16.msra.mxu0 %v1355
          %1404 = vmatprep.mubr.bf16.mxu0 %v1243
          %1405 = vmatmul.mubr.bf16.gmra.mrb[0].mxu0 %v1242
          %v1406 = vpop.f32.mrb[0].mxu0
          %v1407 = vadd.f32 0.0, %v1406
          %v1408 = vpop.f32.mrb[0].mxu0
          %v1409 = vpop.f32.mrb[0].mxu0
          %v1410 = vpop.f32.mrb[0].mxu0
          %1411 = vdwg.mxu0
          %1412 = vst [vmem:[#allocation5] sm:$0xff] %v1407
        $region124: #{tpu_custom_call.1} parent=79 // pred_fallthru
          _
        %v1413 = vld [vmem:[#allocation4] sm:$0xf]
        %v1414 = vld [vmem:[%s621] sm:$0xff]
        %v1415 = vld [vmem:[%s621 + $0x8] sm:$0xff]
        %v1416 = vld [vmem:[%s621 + $0x10] sm:$0xff]
        %v1417 = vld [vmem:[%s621 + $0x18] sm:$0xff]
        %v1418 = vld [vmem:[%s621 + $0x20] sm:$0xff]
        %v1419 = vld [vmem:[%s621 + $0x28] sm:$0xff]
        %v1420 = vld [vmem:[%s621 + $0x30] sm:$0xff]
        %v1421 = vld [vmem:[%s621 + $0x38] sm:$0xff]
        %v1422 = vld [vmem:[%s621 + $0x40] sm:$0xff]
        %v1423 = vld [vmem:[%s621 + $0x48] sm:$0xff]
        %v1424 = vld [vmem:[%s621 + $0x50] sm:$0xff]
        %v1425 = vld [vmem:[%s621 + $0x58] sm:$0xff]
        %v1426 = vld [vmem:[%s621 + $0x60] sm:$0xff]
        %v1427 = vld [vmem:[%s621 + $0x68] sm:$0xff]
        %v1428 = vld [vmem:[%s621 + $0x70] sm:$0xff]
        %v1429 = vld [vmem:[%s621 + $0x78] sm:$0xff]
        %v1446 = vunpack.c.l.b16 %v1414
        %v1447 = vunpack.c.h.b16 %v1414
        %v1448 = vunpack.c.l.b16 %v1415
        %v1449 = vunpack.c.h.b16 %v1415
        %v1450 = vunpack.c.l.b16 %v1416
        %v1451 = vunpack.c.h.b16 %v1416
        %v1452 = vunpack.c.l.b16 %v1417
        %v1453 = vunpack.c.h.b16 %v1417
        %v1454 = vunpack.c.l.b16 %v1418
        %v1455 = vunpack.c.h.b16 %v1418
        %v1456 = vunpack.c.l.b16 %v1419
        %v1457 = vunpack.c.h.b16 %v1419
        %v1458 = vunpack.c.l.b16 %v1420
        %v1459 = vunpack.c.h.b16 %v1420
        %v1460 = vunpack.c.l.b16 %v1421
        %v1461 = vunpack.c.h.b16 %v1421
        %v1462 = vunpack.c.l.b16 %v1422
        %v1463 = vunpack.c.h.b16 %v1422
        %v1464 = vunpack.c.l.b16 %v1423
        %v1465 = vunpack.c.h.b16 %v1423
        %v1466 = vunpack.c.l.b16 %v1424
        %v1467 = vunpack.c.h.b16 %v1424
        %v1468 = vunpack.c.l.b16 %v1425
        %v1469 = vunpack.c.h.b16 %v1425
        %v1470 = vunpack.c.l.b16 %v1426
        %v1471 = vunpack.c.h.b16 %v1426
        %v1472 = vunpack.c.l.b16 %v1427
        %v1473 = vunpack.c.h.b16 %v1427
        %v1474 = vunpack.c.l.b16 %v1428
        %v1475 = vunpack.c.h.b16 %v1428
        %v1476 = vunpack.c.l.b16 %v1429
        %v1477 = vunpack.c.h.b16 %v1429
        %v1478 = vpack.c.b16 %v1448, %v1446
        %v1479 = vpack.c.b16 %v1449, %v1447
        %v1480 = vpack.c.b16 %v1452, %v1450
        %v1481 = vpack.c.b16 %v1453, %v1451
        %v1482 = vpack.c.b16 %v1456, %v1454
        %v1483 = vpack.c.b16 %v1457, %v1455
        %v1484 = vpack.c.b16 %v1460, %v1458
        %v1485 = vpack.c.b16 %v1461, %v1459
        %v1486 = vpack.c.b16 %v1464, %v1462
        %v1487 = vpack.c.b16 %v1465, %v1463
        %v1488 = vpack.c.b16 %v1468, %v1466
        %v1489 = vpack.c.b16 %v1469, %v1467
        %v1490 = vpack.c.b16 %v1472, %v1470
        %v1491 = vpack.c.b16 %v1473, %v1471
        %v1492 = vpack.c.b16 %v1476, %v1474
        %v1493 = vpack.c.b16 %v1477, %v1475
        %1510 = vmatprep.subr.bf16.mxu0 %v1479
        %1511 = vmatpush1.bf16.msra.mxu0 %v1478
        %1512 = vmatprep.subr.bf16.mxu0 %v1481
        %1513 = vmatpush1.bf16.msra.mxu0 %v1480
        %1514 = vmatprep.subr.bf16.mxu0 %v1483
        %1515 = vmatpush1.bf16.msra.mxu0 %v1482
        %1516 = vmatprep.subr.bf16.mxu0 %v1485
        %1517 = vmatpush1.bf16.msra.mxu0 %v1484
        %1518 = vmatprep.subr.bf16.mxu0 %v1487
        %1519 = vmatpush1.bf16.msra.mxu0 %v1486
        %1520 = vmatprep.subr.bf16.mxu0 %v1489
        %1521 = vmatpush1.bf16.msra.mxu0 %v1488
        %1522 = vmatprep.subr.bf16.mxu0 %v1491
        %1523 = vmatpush1.bf16.msra.mxu0 %v1490
        %1524 = vmatprep.subr.bf16.mxu0 %v1493
        %1525 = vmatpush1.bf16.msra.mxu0 %v1492
        %1526 = vmatprep.subr.bf16.mxu0 0
        %1527 = vmatpush1.bf16.msra.mxu0 0
        %1528 = vmatprep.subr.bf16.mxu0 0
        %1529 = vmatpush1.bf16.msra.mxu0 0
        %1530 = vmatprep.subr.bf16.mxu0 0
        %1531 = vmatpush1.bf16.msra.mxu0 0
        %1532 = vmatprep.subr.bf16.mxu0 0
        %1533 = vmatpush1.bf16.msra.mxu0 0
        %1534 = vmatprep.subr.bf16.mxu0 0
        %1535 = vmatpush1.bf16.msra.mxu0 0
        %1536 = vmatprep.subr.bf16.mxu0 0
        %1537 = vmatpush1.bf16.msra.mxu0 0
        %1538 = vmatprep.subr.bf16.mxu0 0
        %1539 = vmatpush1.bf16.msra.mxu0 0
        %1540 = vmatprep.subr.bf16.mxu0 0
        %1541 = vmatpush1.bf16.msra.mxu0 0
        %1542 = vmatprep.mubr.bf16.mxu0 0
        %1543 = vmatmul.mubr.bf16.gmra.mrb[0].mxu0 %v1413
        %v1544 = vpop.f32.mrb[0].mxu0
        %v1545 = vadd.f32 0.0, %v1544
        %v1546 = vpop.f32.mrb[0].mxu0
        %v1547 = vadd.f32 0.0, %v1546
        %v1548 = vpop.f32.mrb[0].mxu0
        %v1549 = vpop.f32.mrb[0].mxu0
        %1550 = vdwg.mxu0
        %v1551 = vld [vmem:[%s630] sm:$0xff]
        %v1552 = vld [vmem:[%s630 + $0x8] sm:$0xff]
        %v1553 = vld [vmem:[%s630 + $0x10] sm:$0xff]
        %v1554 = vld [vmem:[%s630 + $0x18] sm:$0xff]
        %v1555 = vld [vmem:[%s630 + $0x20] sm:$0xff]
        %v1556 = vld [vmem:[%s630 + $0x28] sm:$0xff]
        %v1557 = vld [vmem:[%s630 + $0x30] sm:$0xff]
        %v1558 = vld [vmem:[%s630 + $0x38] sm:$0xff]
        %v1559 = vld [vmem:[%s630 + $0x40] sm:$0xff]
        %v1560 = vld [vmem:[%s630 + $0x48] sm:$0xff]
        %v1561 = vld [vmem:[%s630 + $0x50] sm:$0xff]
        %v1562 = vld [vmem:[%s630 + $0x58] sm:$0xff]
        %v1563 = vld [vmem:[%s630 + $0x60] sm:$0xff]
        %v1564 = vld [vmem:[%s630 + $0x68] sm:$0xff]
        %v1565 = vld [vmem:[%s630 + $0x70] sm:$0xff]
        %v1566 = vld [vmem:[%s630 + $0x78] sm:$0xff]
        %v1583 = vunpack.c.l.b16 %v1551
        %v1584 = vunpack.c.h.b16 %v1551
        %v1585 = vunpack.c.l.b16 %v1552
        %v1586 = vunpack.c.h.b16 %v1552
        %v1587 = vunpack.c.l.b16 %v1553
        %v1588 = vunpack.c.h.b16 %v1553
        %v1589 = vunpack.c.l.b16 %v1554
        %v1590 = vunpack.c.h.b16 %v1554
        %v1591 = vunpack.c.l.b16 %v1555
        %v1592 = vunpack.c.h.b16 %v1555
        %v1593 = vunpack.c.l.b16 %v1556
        %v1594 = vunpack.c.h.b16 %v1556
        %v1595 = vunpack.c.l.b16 %v1557
        %v1596 = vunpack.c.h.b16 %v1557
        %v1597 = vunpack.c.l.b16 %v1558
        %v1598 = vunpack.c.h.b16 %v1558
        %v1599 = vunpack.c.l.b16 %v1559
        %v1600 = vunpack.c.h.b16 %v1559
        %v1601 = vunpack.c.l.b16 %v1560
        %v1602 = vunpack.c.h.b16 %v1560
        %v1603 = vunpack.c.l.b16 %v1561
        %v1604 = vunpack.c.h.b16 %v1561
        %v1605 = vunpack.c.l.b16 %v1562
        %v1606 = vunpack.c.h.b16 %v1562
        %v1607 = vunpack.c.l.b16 %v1563
        %v1608 = vunpack.c.h.b16 %v1563
        %v1609 = vunpack.c.l.b16 %v1564
        %v1610 = vunpack.c.h.b16 %v1564
        %v1611 = vunpack.c.l.b16 %v1565
        %v1612 = vunpack.c.h.b16 %v1565
        %v1613 = vunpack.c.l.b16 %v1566
        %v1614 = vunpack.c.h.b16 %v1566
        %v1615 = vpack.c.b16 %v1585, %v1583
        %v1616 = vpack.c.b16 %v1586, %v1584
        %v1617 = vpack.c.b16 %v1589, %v1587
        %v1618 = vpack.c.b16 %v1590, %v1588
        %v1619 = vpack.c.b16 %v1593, %v1591
        %v1620 = vpack.c.b16 %v1594, %v1592
        %v1621 = vpack.c.b16 %v1597, %v1595
        %v1622 = vpack.c.b16 %v1598, %v1596
        %v1623 = vpack.c.b16 %v1601, %v1599
        %v1624 = vpack.c.b16 %v1602, %v1600
        %v1625 = vpack.c.b16 %v1605, %v1603
        %v1626 = vpack.c.b16 %v1606, %v1604
        %v1627 = vpack.c.b16 %v1609, %v1607
        %v1628 = vpack.c.b16 %v1610, %v1608
        %v1629 = vpack.c.b16 %v1613, %v1611
        %v1630 = vpack.c.b16 %v1614, %v1612
        %1647 = vmatprep.subr.bf16.mxu0 %v1616
        %1648 = vmatpush1.bf16.msra.mxu0 %v1615
        %1649 = vmatprep.subr.bf16.mxu0 %v1618
        %1650 = vmatpush1.bf16.msra.mxu0 %v1617
        %1651 = vmatprep.subr.bf16.mxu0 %v1620
        %1652 = vmatpush1.bf16.msra.mxu0 %v1619
        %1653 = vmatprep.subr.bf16.mxu0 %v1622
        %1654 = vmatpush1.bf16.msra.mxu0 %v1621
        %1655 = vmatprep.subr.bf16.mxu0 %v1624
        %1656 = vmatpush1.bf16.msra.mxu0 %v1623
        %1657 = vmatprep.subr.bf16.mxu0 %v1626
        %1658 = vmatpush1.bf16.msra.mxu0 %v1625
        %1659 = vmatprep.subr.bf16.mxu0 %v1628
        %1660 = vmatpush1.bf16.msra.mxu0 %v1627
        %1661 = vmatprep.subr.bf16.mxu0 %v1630
        %1662 = vmatpush1.bf16.msra.mxu0 %v1629
        %1663 = vmatprep.subr.bf16.mxu0 0
        %1664 = vmatpush1.bf16.msra.mxu0 0
        %1665 = vmatprep.subr.bf16.mxu0 0
        %1666 = vmatpush1.bf16.msra.mxu0 0
        %1667 = vmatprep.subr.bf16.mxu0 0
        %1668 = vmatpush1.bf16.msra.mxu0 0
        %1669 = vmatprep.subr.bf16.mxu0 0
        %1670 = vmatpush1.bf16.msra.mxu0 0
        %1671 = vmatprep.subr.bf16.mxu0 0
        %1672 = vmatpush1.bf16.msra.mxu0 0
        %1673 = vmatprep.subr.bf16.mxu0 0
        %1674 = vmatpush1.bf16.msra.mxu0 0
        %1675 = vmatprep.subr.bf16.mxu0 0
        %1676 = vmatpush1.bf16.msra.mxu0 0
        %1677 = vmatprep.subr.bf16.mxu0 0
        %1678 = vmatpush1.bf16.msra.mxu0 0
        %1679 = vmatprep.mubr.bf16.mxu0 0
        %1680 = vmatmul.mubr.bf16.gmra.mrb[0].mxu0 %v1413
        %v1681 = vpop.f32.mrb[0].mxu0
        %v1682 = vadd.f32 0.0, %v1681
        %v1683 = vpop.f32.mrb[0].mxu0
        %v1684 = vadd.f32 0.0, %v1683
        %v1685 = vpop.f32.mrb[0].mxu0
        %v1686 = vpop.f32.mrb[0].mxu0
        %1687 = vdwg.mxu0
        %v1688 = vxor.u32 %v1682, 2147483648
        %v1689 = vxor.u32 %v1684, 2147483648
        %v1690 = vmul.f32 %v1688, 1.442695
        %v1691 = vpow.pop %v1690
        %v1692 = vmul.f32 %v1689, 1.442695
        %v1693 = vpow.pop %v1692
        %v1694 = vadd.f32 %v1691, 1.0
        %v1695 = vadd.f32 %v1693, 1.0
        %v1696 = vrcp.pop %v1694
        %v1697 = vmul.f32 1.0, %v1696
        %v1698 = vrcp.pop %v1695
        %v1699 = vmul.f32 1.0, %v1698
        %v1700 = vmul.f32 %v1682, %v1697
        %v1701 = vmul.f32 %v1684, %v1699
        %v1702 = vmul.f32 %v1545, %v1700
        %v1703 = vmul.f32 %v1547, %v1701
        %v1704 = vpack.c.bf16 %v1702, %v1702
        %v1705 = vpack.c.bf16 %v1703, %v1703
        %v1706 = vld [vmem:[#allocation5] sm:$0xff]
        %v1707 = vld [vmem:[%s639] sm:$0xf]
        %v1708 = vld [vmem:[%s639 + $0x4] sm:$0xf]
        %v1709 = vld [vmem:[%s639 + $0x8] sm:$0xf]
        %v1710 = vld [vmem:[%s639 + $0xc] sm:$0xf]
        %v1711 = vld [vmem:[%s639 + $0x10] sm:$0xf]
        %v1712 = vld [vmem:[%s639 + $0x14] sm:$0xf]
        %v1713 = vld [vmem:[%s639 + $0x18] sm:$0xf]
        %v1714 = vld [vmem:[%s639 + $0x1c] sm:$0xf]
        %v1715 = vld [vmem:[%s639 + $0x20] sm:$0xf]
        %v1716 = vld [vmem:[%s639 + $0x24] sm:$0xf]
        %v1717 = vld [vmem:[%s639 + $0x28] sm:$0xf]
        %v1718 = vld [vmem:[%s639 + $0x2c] sm:$0xf]
        %v1719 = vld [vmem:[%s639 + $0x30] sm:$0xf]
        %v1720 = vld [vmem:[%s639 + $0x34] sm:$0xf]
        %v1721 = vld [vmem:[%s639 + $0x38] sm:$0xf]
        %v1722 = vld [vmem:[%s639 + $0x3c] sm:$0xf]
        %v1723 = vld [vmem:[%s639 + $0x40] sm:$0xf]
        %v1724 = vld [vmem:[%s639 + $0x44] sm:$0xf]
        %v1725 = vld [vmem:[%s639 + $0x48] sm:$0xf]
        %v1726 = vld [vmem:[%s639 + $0x4c] sm:$0xf]
        %v1727 = vld [vmem:[%s639 + $0x50] sm:$0xf]
        %v1728 = vld [vmem:[%s639 + $0x54] sm:$0xf]
        %v1729 = vld [vmem:[%s639 + $0x58] sm:$0xf]
        %v1730 = vld [vmem:[%s639 + $0x5c] sm:$0xf]
        %v1731 = vld [vmem:[%s639 + $0x60] sm:$0xf]
        %v1732 = vld [vmem:[%s639 + $0x64] sm:$0xf]
        %v1733 = vld [vmem:[%s639 + $0x68] sm:$0xf]
        %v1734 = vld [vmem:[%s639 + $0x6c] sm:$0xf]
        %v1735 = vld [vmem:[%s639 + $0x70] sm:$0xf]
        %v1736 = vld [vmem:[%s639 + $0x74] sm:$0xf]
        %v1737 = vld [vmem:[%s639 + $0x78] sm:$0xf]
        %v1738 = vld [vmem:[%s639 + $0x7c] sm:$0xf]
        %v1771 = vunpack.c.l.b16 %v1707
        %v1772 = vunpack.c.l.b16 %v1708
        %v1773 = vunpack.c.l.b16 %v1709
        %v1774 = vunpack.c.l.b16 %v1710
        %v1775 = vunpack.c.l.b16 %v1711
        %v1776 = vunpack.c.l.b16 %v1712
        %v1777 = vunpack.c.l.b16 %v1713
        %v1778 = vunpack.c.l.b16 %v1714
        %v1779 = vunpack.c.l.b16 %v1715
        %v1780 = vunpack.c.l.b16 %v1716
        %v1781 = vunpack.c.l.b16 %v1717
        %v1782 = vunpack.c.l.b16 %v1718
        %v1783 = vunpack.c.l.b16 %v1719
        %v1784 = vunpack.c.l.b16 %v1720
        %v1785 = vunpack.c.l.b16 %v1721
        %v1786 = vunpack.c.l.b16 %v1722
        %v1787 = vunpack.c.l.b16 %v1723
        %v1788 = vunpack.c.l.b16 %v1724
        %v1789 = vunpack.c.l.b16 %v1725
        %v1790 = vunpack.c.l.b16 %v1726
        %v1791 = vunpack.c.l.b16 %v1727
        %v1792 = vunpack.c.l.b16 %v1728
        %v1793 = vunpack.c.l.b16 %v1729
        %v1794 = vunpack.c.l.b16 %v1730
        %v1795 = vunpack.c.l.b16 %v1731
        %v1796 = vunpack.c.l.b16 %v1732
        %v1797 = vunpack.c.l.b16 %v1733
        %v1798 = vunpack.c.l.b16 %v1734
        %v1799 = vunpack.c.l.b16 %v1735
        %v1800 = vunpack.c.l.b16 %v1736
        %v1801 = vunpack.c.l.b16 %v1737
        %v1802 = vunpack.c.l.b16 %v1738
        %v1803 = vpack.c.b16 %v1772, %v1771
        %v1804 = vpack.c.b16 %v1774, %v1773
        %v1805 = vpack.c.b16 %v1776, %v1775
        %v1806 = vpack.c.b16 %v1778, %v1777
        %v1807 = vpack.c.b16 %v1780, %v1779
        %v1808 = vpack.c.b16 %v1782, %v1781
        %v1809 = vpack.c.b16 %v1784, %v1783
        %v1810 = vpack.c.b16 %v1786, %v1785
        %v1811 = vpack.c.b16 %v1788, %v1787
        %v1812 = vpack.c.b16 %v1790, %v1789
        %v1813 = vpack.c.b16 %v1792, %v1791
        %v1814 = vpack.c.b16 %v1794, %v1793
        %v1815 = vpack.c.b16 %v1796, %v1795
        %v1816 = vpack.c.b16 %v1798, %v1797
        %v1817 = vpack.c.b16 %v1800, %v1799
        %v1818 = vpack.c.b16 %v1802, %v1801
        %1835 = vmatprep.subr.bf16.mxu0 0
        %1836 = vmatpush1.bf16.msra.mxu0 %v1803
        %1837 = vmatprep.subr.bf16.mxu0 0
        %1838 = vmatpush1.bf16.msra.mxu0 %v1804
        %1839 = vmatprep.subr.bf16.mxu0 0
        %1840 = vmatpush1.bf16.msra.mxu0 %v1805
        %1841 = vmatprep.subr.bf16.mxu0 0
        %1842 = vmatpush1.bf16.msra.mxu0 %v1806
        %1843 = vmatprep.subr.bf16.mxu0 0
        %1844 = vmatpush1.bf16.msra.mxu0 %v1807
        %1845 = vmatprep.subr.bf16.mxu0 0
        %1846 = vmatpush1.bf16.msra.mxu0 %v1808
        %1847 = vmatprep.subr.bf16.mxu0 0
        %1848 = vmatpush1.bf16.msra.mxu0 %v1809
        %1849 = vmatprep.subr.bf16.mxu0 0
        %1850 = vmatpush1.bf16.msra.mxu0 %v1810
        %1851 = vmatprep.subr.bf16.mxu0 0
        %1852 = vmatpush1.bf16.msra.mxu0 %v1811
        %1853 = vmatprep.subr.bf16.mxu0 0
        %1854 = vmatpush1.bf16.msra.mxu0 %v1812
        %1855 = vmatprep.subr.bf16.mxu0 0
        %1856 = vmatpush1.bf16.msra.mxu0 %v1813
        %1857 = vmatprep.subr.bf16.mxu0 0
        %1858 = vmatpush1.bf16.msra.mxu0 %v1814
        %1859 = vmatprep.subr.bf16.mxu0 0
        %1860 = vmatpush1.bf16.msra.mxu0 %v1815
        %1861 = vmatprep.subr.bf16.mxu0 0
        %1862 = vmatpush1.bf16.msra.mxu0 %v1816
        %1863 = vmatprep.subr.bf16.mxu0 0
        %1864 = vmatpush1.bf16.msra.mxu0 %v1817
        %1865 = vmatprep.subr.bf16.mxu0 0
        %1866 = vmatpush1.bf16.msra.mxu0 %v1818
        %1867 = vmatprep.mubr.bf16.mxu0 %v1705
        %1868 = vmatmul.mubr.bf16.gmra.mrb[0].mxu0 %v1704
        %v1869 = vpop.f32.mrb[0].mxu0
        %v1870 = vadd.f32 0.0, %v1869
        %v1871 = vpop.f32.mrb[0].mxu0
        %v1872 = vpop.f32.mrb[0].mxu0
        %v1873 = vpop.f32.mrb[0].mxu0
        %1874 = vdwg.mxu0
        %v1875 = vadd.f32 %v1706, %v1870
        %1876 = vst [vmem:[#allocation5] sm:$0xff] %v1875
        %p1877 = scmp.eq.s32.totalorder %s42, 1
        // Predicated region
        $region125: #{tpu_custom_call.1} parent=79 // pred_check
          %p1878 = pneg %p1877
        $region126: #{tpu_custom_call.1} parent=79 // pred_check_branch
          %1880 = sbr.rel (%p1878) target = $region128
        $region127: #{tpu_custom_call.1} parent=79 // pred_region
          %v1881 = vld [vmem:[#allocation5] sm:$0xff]
          %v1882 = vld [vmem:[%s12] sm:$0x1]
          %v1883 = vld [vmem:[%s13] sm:$0x1]
          %1884 = vadd.xlane.f32.xlu0 %v1881
          %v1885 = vpop.xlane.xlu0 %1884
          %v1886 = vrcp.pop 128.0
          %v1887 = vmul.f32 %v1885, %v1886
          %v1888 = vsub.f32 %v1881, %v1887
          %v1889 = vmul.f32 %v1888, %v1888
          %1890 = vadd.xlane.f32.xlu0 %v1889
          %v1891 = vpop.xlane.xlu0 %1890
          %v1892 = vmul.f32 %v1891, %v1886
          %v1893 = vadd.f32 %v1892, 1e-05
          %v1894 = vrsqrt.pop %v1893
          %v1895 = vmul.f32 %v1888, %v1894
          %v1897 = vlaneseq
          %v1898 = vshrl.u32 %v1897, 7
          %v1899 = vsub.s32 0, %v1898
          %v1900 = vrot.slane %v1882, %v1899
          %v1902 = vmul.f32 %v1895, %v1900
          %v1904 = vlaneseq
          %v1905 = vshrl.u32 %v1904, 7
          %v1906 = vsub.s32 0, %v1905
          %v1907 = vrot.slane %v1883, %v1906
          %v1909 = vadd.f32 %v1902, %v1907
          %v1910 = vtanh.pop %v1909
          %v1911 = vld [vmem:[%s600] sm:$0xff]
          %v1912 = vadd.f32 %v1910, %v1911
          %v1913 = vpack.c.bf16 %v1912, %v1912
          %v1914 = vld [vmem:[#allocation18] sm:$0xf]
          %v1915 = vld [vmem:[#allocation18 + $0x4] sm:$0xf]
          %v1916 = vld [vmem:[#allocation18 + $0x8] sm:$0xf]
          %v1917 = vld [vmem:[#allocation18 + $0xc] sm:$0xf]
          %v1918 = vld [vmem:[#allocation18 + $0x10] sm:$0xf]
          %v1919 = vld [vmem:[#allocation18 + $0x14] sm:$0xf]
          %v1920 = vld [vmem:[#allocation18 + $0x18] sm:$0xf]
          %v1921 = vld [vmem:[#allocation18 + $0x1c] sm:$0xf]
          %v1922 = vld [vmem:[#allocation18 + $0x20] sm:$0xf]
          %v1923 = vld [vmem:[#allocation18 + $0x24] sm:$0xf]
          %v1924 = vld [vmem:[#allocation18 + $0x28] sm:$0xf]
          %v1925 = vld [vmem:[#allocation18 + $0x2c] sm:$0xf]
          %v1926 = vld [vmem:[#allocation18 + $0x30] sm:$0xf]
          %v1927 = vld [vmem:[#allocation18 + $0x34] sm:$0xf]
          %v1928 = vld [vmem:[#allocation18 + $0x38] sm:$0xf]
          %v1929 = vld [vmem:[#allocation18 + $0x3c] sm:$0xf]
          %v1930 = vld [vmem:[%s15] sm:$0x1]
          %v1932 = vlaneseq
          %v1933 = vshrl.u32 %v1932, 7
          %v1934 = vsub.s32 0, %v1933
          %v1935 = vrot.slane %v1930, %v1934
          %v1953 = vunpack.c.l.b16 %v1914
          %v1954 = vunpack.c.l.b16 %v1915
          %v1955 = vunpack.c.l.b16 %v1916
          %v1956 = vunpack.c.l.b16 %v1917
          %v1957 = vunpack.c.l.b16 %v1918
          %v1958 = vunpack.c.l.b16 %v1919
          %v1959 = vunpack.c.l.b16 %v1920
          %v1960 = vunpack.c.l.b16 %v1921
          %v1961 = vunpack.c.l.b16 %v1922
          %v1962 = vunpack.c.l.b16 %v1923
          %v1963 = vunpack.c.l.b16 %v1924
          %v1964 = vunpack.c.l.b16 %v1925
          %v1965 = vunpack.c.l.b16 %v1926
          %v1966 = vunpack.c.l.b16 %v1927
          %v1967 = vunpack.c.l.b16 %v1928
          %v1968 = vunpack.c.l.b16 %v1929
          %v1969 = vpack.c.b16 %v1954, %v1953
          %v1970 = vpack.c.b16 %v1956, %v1955
          %v1971 = vpack.c.b16 %v1958, %v1957
          %v1972 = vpack.c.b16 %v1960, %v1959
          %v1973 = vpack.c.b16 %v1962, %v1961
          %v1974 = vpack.c.b16 %v1964, %v1963
          %v1975 = vpack.c.b16 %v1966, %v1965
          %v1976 = vpack.c.b16 %v1968, %v1967
          %1985 = vmatprep.subr.bf16.mxu0 0
          %1986 = vmatpush1.bf16.msra.mxu0 %v1969
          %1987 = vmatprep.subr.bf16.mxu0 0
          %1988 = vmatpush1.bf16.msra.mxu0 %v1970
          %1989 = vmatprep.subr.bf16.mxu0 0
          %1990 = vmatpush1.bf16.msra.mxu0 %v1971
          %1991 = vmatprep.subr.bf16.mxu0 0
          %1992 = vmatpush1.bf16.msra.mxu0 %v1972
          %1993 = vmatprep.subr.bf16.mxu0 0
          %1994 = vmatpush1.bf16.msra.mxu0 %v1973
          %1995 = vmatprep.subr.bf16.mxu0 0
          %1996 = vmatpush1.bf16.msra.mxu0 %v1974
          %1997 = vmatprep.subr.bf16.mxu0 0
          %1998 = vmatpush1.bf16.msra.mxu0 %v1975
          %1999 = vmatprep.subr.bf16.mxu0 0
          %2000 = vmatpush1.bf16.msra.mxu0 %v1976
          %2001 = vmatprep.subr.bf16.mxu0 0
          %2002 = vmatpush1.bf16.msra.mxu0 0
          %2003 = vmatprep.subr.bf16.mxu0 0
          %2004 = vmatpush1.bf16.msra.mxu0 0
          %2005 = vmatprep.subr.bf16.mxu0 0
          %2006 = vmatpush1.bf16.msra.mxu0 0
          %2007 = vmatprep.subr.bf16.mxu0 0
          %2008 = vmatpush1.bf16.msra.mxu0 0
          %2009 = vmatprep.subr.bf16.mxu0 0
          %2010 = vmatpush1.bf16.msra.mxu0 0
          %2011 = vmatprep.subr.bf16.mxu0 0
          %2012 = vmatpush1.bf16.msra.mxu0 0
          %2013 = vmatprep.subr.bf16.mxu0 0
          %2014 = vmatpush1.bf16.msra.mxu0 0
          %2015 = vmatprep.subr.bf16.mxu0 0
          %2016 = vmatpush1.bf16.msra.mxu0 0
          %2017 = vmatprep.mubr.bf16.mxu0 0
          %2018 = vmatmul.mubr.bf16.gmra.mrb[0].mxu0 %v1913
          %v2019 = vpop.f32.mrb[0].mxu0
          %v2020 = vadd.f32 %v1935, %v2019
          %v2021 = vpop.f32.mrb[0].mxu0
          %v2022 = vpop.f32.mrb[0].mxu0
          %v2023 = vpop.f32.mrb[0].mxu0
          %2024 = vdwg.mxu0
          %v2025 = vtanh.pop %v2020
          %2026 = vst [vmem:[%s704] sm:$0xff] %v2025
        $region128: #{tpu_custom_call.1} parent=79 // pred_fallthru
          _
        %s2027 = sand.u32 %s401, 1
        %s2028 = scalar_lea.sflag [#allocation9], %s2027
        %s2029 = sand.u32 %s401, 1
        %s2030 = smul.addr %s2029, 8
        %s2031 = scalar_lea.vmem [#allocation19], %s2030
        // Predicated region
        $region129: #{tpu_custom_call.1} parent=79 // pred_check
          %p2032 = pneg %p411
        $region130: #{tpu_custom_call.1} parent=79 // pred_check_branch
          %2034 = sbr.rel (%p2032) target = $region132
        $region131: #{tpu_custom_call.1} parent=79 // pred_region
          %s2036 = ssub.s32 128, 128
          %2037 = vsyncadd %s2028, %s2036
          %s2038 = smul.addr %s40, 2
          %s2039 = sadd.s32 %s41, %s2038
          %s2040 = smul.addr %s2039, 128
          %s2041 = scalar_lea.hbm %s16, %s2040
          %s2043 = sshll.u32 %s2031, 4
          %s2044 = int_to_ptr.vmem [resolvable:$true] %s2043
          %2046 = dma.vmem_to_hbm [thread:$0]  %s2044, 128, %s2041, %s2028
        $region132: #{tpu_custom_call.1} parent=79 // pred_fallthru
          _
      $region80: #{tpu_custom_call.1} parent=5 // pred_fallthru
        _
      %p2047 = scmp.le.s32.totalorder 2, %s30
      // Predicated region
      $region133: #{tpu_custom_call.1} parent=5 // pred_check
        %p2048 = pneg %p2047
      $region134: #{tpu_custom_call.1} parent=5 // pred_check_branch
        %2050 = sbr.rel (%p2048) target = $region136
      $region135: #{tpu_custom_call.1} parent=5 // pred_region
        %s2051 = ssub.s32 %s30, 2
        // Predicated region
        $region137: #{tpu_custom_call.1} parent=135 // pred_check
          %p2052 = pneg %p417
        $region138: #{tpu_custom_call.1} parent=135 // pred_check_branch
          %2054 = sbr.rel (%p2052) target = $region140
        $region139: #{tpu_custom_call.1} parent=135 // pred_region
          %s2055 = sand.u32 %s402, 1
          %s2056 = scalar_lea.sflag [#allocation9], %s2055
          %s2057 = sand.u32 %s402, 1
          %s2058 = smul.addr %s2057, 8
          %s2059 = scalar_lea.vmem [#allocation19], %s2058
          %2060 = dma.done %s2056, 128
        $region140: #{tpu_custom_call.1} parent=135 // pred_fallthru
          _
      $region136: #{tpu_custom_call.1} parent=5 // pred_fallthru
        _
    $region6: #{tpu_custom_call.1} parent=1 // loop_footer
      %s34 = sadd.s32 1, %s30
    $region7: #{tpu_custom_call.1} parent=1 // loop_footer_branch
      %29 = sbr.rel target = $region3
    $region8: #{tpu_custom_call.1} parent=1 // loop_exit
      _
    %2061 = vsyncpa [#allocation8], 1
    %s2062 = scalar_lea.sflag [#allocation8], 1
    %2063 = vsyncpa %s2062, 1
    %2064 = vsyncpa [#allocation11], 1
    %2065 = vsyncpa [#allocation14], 1
    %2066 = vsyncpa [#allocation9], 1
    %s2067 = scalar_lea.sflag [#allocation9], 1
    %2068 = vsyncpa %s2067, 1
  %2069 = vsyncmov [#allocation6]
  %s2070 = vpop.sfrf %2069
  %p2071 = scmp.eq.s32.totalorder %s2070, 0
  %p2072 = pneg %p2071
  %2074 = shalt.err (%p2072)

</llo_original>
